<compile_context>
chip_gen: v6e
topology: v6e:2x2x1
jax: 0.10.0
libtpu: 0.0.40
codegen_flags: <defaults>
</compile_context>

<pallas_src>
import math
from functools import partial

import jax
import jax.numpy as jnp
import numpy as np
from jax import lax
from jax.experimental import pallas as pl
from jax.experimental.pallas import tpu as pltpu


def _round_up(x, m):
    return ((x + m - 1) // m) * m


# ----------------------------------------------------------------------------
# Fused depthwise-separable chain (stride == 1, "same" padding), lane-dense.
# ----------------------------------------------------------------------------
def _fused_chain_kernel(mask_ref, x_ref, *refs, ksize, pad, width,
                        block_cfg, has_folded, mm_dtype):
    """depth x [ (ReLU) -> depthwise kxk -> pointwise 1x1 -> BN ] fused.

    mask_ref : (k*k, 1, L)  f32 0/1 boundary masks (resident, constant map)
    x_ref    : (1, C0p, L)  activation; flattened spatial (and maybe batch)
                            on the 128-wide lane axis
    refs     : per block  folded: w (Coutp, k*k*Cinp), b (Coutp, 1)
                          split : dw (k*k, Cinp, 1), w (Coutp, Cinp), b (Coutp, 1)
               then out_ref (1, Coutp, L) and, if any folded block exists,
               the stacked-tap VMEM scratch (k*k*max_cin, L).
    """
    if has_folded:
        out_ref, tap_ref = refs[-2], refs[-1]
        param_refs = refs[:-2]
    else:
        out_ref, tap_ref = refs[-1], None
        param_refs = refs[:-1]
    k2 = ksize * ksize
    lane = x_ref.shape[-1]

    def mm(a, b):
        return jnp.dot(a.astype(mm_dtype), b.astype(mm_dtype),
                       preferred_element_type=jnp.float32)

    def tap_of(act, t):
        kh, kw = t // ksize, t % ksize
        sh = (kh - pad) * width + (kw - pad)             # flat source offset
        if sh == 0:                                      # center tap: mask==1
            return act
        tap = pltpu.roll(act, (-sh) % lane, axis=1)      # lane rotate (XLU)
        return tap * mask_ref[t]                         # zero the halo taps

    act = x_ref[0].astype(jnp.float32)                   # (C0p, L)
    pi = 0
    for (cin_p, cout_p, relu_in, mode) in block_cfg:
        if relu_in:
            act = jnp.maximum(act, 0.0)                  # ReLU(0)=0, pad stays 0
        if mode == "folded":
            w_ref, b_ref = param_refs[pi], param_refs[pi + 1]
            pi += 2
            # Stack all taps into consecutive (8-aligned) sublane rows of the
            # VMEM scratch, then a single (Coutp, k2*Cinp)x(k2*Cinp, L) matmul.
            for t in range(k2):
                tap_ref[t * cin_p:(t + 1) * cin_p, :] = tap_of(act, t)
            stacked = tap_ref[0:k2 * cin_p, :]
            act = mm(w_ref[...], stacked) + b_ref[...].astype(jnp.float32)
        else:  # "split": depthwise on the VPU, one pointwise matmul on the MXU
            dw_ref, w_ref, b_ref = (param_refs[pi], param_refs[pi + 1],
                                    param_refs[pi + 2])
            pi += 3
            dwacc = tap_of(act, 0) * dw_ref[0].astype(jnp.float32)
            for t in range(1, k2):
                dwacc = dwacc + tap_of(act, t) * dw_ref[t].astype(jnp.float32)
            act = mm(w_ref[...], dwacc) + b_ref[...].astype(jnp.float32)
    out_ref[0] = act.astype(out_ref.dtype)               # unmasked lane-dense store


def _build_masks(h, w, ksize, pad, hw_pad, n_tile):
    """Precomputed (k*k, 1, L) 0/1 masks; per-sample period hw_pad when tiled."""
    pos = np.arange(h * w)
    row, col = pos // w, pos % w
    m = np.zeros((ksize * ksize, hw_pad), np.float32)
    for kh in range(ksize):
        for kw in range(ksize):
            dr, dc = kh - pad, kw - pad
            valid = ((row + dr >= 0) & (row + dr < h) &
                     (col + dc >= 0) & (col + dc < w))
            m[kh * ksize + kw, :h * w] = valid.astype(np.float32)
    if n_tile > 1:
        m = np.tile(m, (1, n_tile))
    return jnp.asarray(m[:, None, :])


def _run_fused_chain(x_nchw, blocks, ksize, pad, mm_dtype, fold_opt):
    n, c0, h, w = x_nchw.shape
    hw = h * w
    hw_pad = _round_up(hw, 128)
    k2 = ksize * ksize
    c0_p = blocks[0]["cin_p"]
    cout, cout_p = blocks[-1]["cout"], blocks[-1]["cout_p"]

    folded_cins = [b["cin_p"] for b in blocks if b["mode"] == "folded"]
    has_folded = bool(folded_cins)
    scratch_rows = k2 * max(folded_cins) if has_folded else 0
    cmax_p = max(max(b["cin_p"], b["cout_p"]) for b in blocks)

    param_arrays, param_specs, block_cfg = [], [], []
    param_bytes = 0
    for b in blocks:
        block_cfg.append((b["cin_p"], b["cout_p"], b["relu_in"], b["mode"]))
        if b["mode"] == "folded":
            arrs = [b["wstack_p"], b["bias_col_p"]]
        else:
            arrs = [b["dwcol_p"], b["wpw_p"], b["bias_col_p"]]
        for a in arrs:
            param_arrays.append(a)
            param_specs.append(
                pl.BlockSpec(a.shape, lambda i, nd=a.ndim: (0,) * nd))
            param_bytes += int(a.size) * a.dtype.itemsize

    def footprint(lane_w):
        act_b = 4 * lane_w
        return (2 * (c0_p * act_b + k2 * act_b + param_bytes)
                + 2 * cout_p * act_b
                + scratch_rows * act_b
                + 6 * cmax_p * act_b)            # headroom for live intermediates

    if fold_opt is None:
        fold = footprint(n * hw_pad) <= (24 << 20)   # small maps: one grid step
    else:
        fold = bool(fold_opt)
    # TODO(synk): for large feature maps on v7x (64 MiB VMEM), add spatial
    # row-tiling with a `pad`-row halo instead of whole-image blocks.

    x = x_nchw.reshape(n, c0, hw)                        # free reshape
    if c0_p != c0:
        x = jnp.pad(x, ((0, 0), (0, c0_p - c0), (0, 0)))
    if hw_pad != hw:
        x = jnp.pad(x, ((0, 0), (0, 0), (0, hw_pad - hw)))

    if fold:
        lane_w, nb = n * hw_pad, 1
        xk = jnp.transpose(x, (1, 0, 2)).reshape(1, c0_p, lane_w)
        masks = _build_masks(h, w, ksize, pad, hw_pad, n)
    else:
        lane_w, nb = hw_pad, n
        xk = x
        masks = _build_masks(h, w, ksize, pad, hw_pad, 1)

    kern = partial(_fused_chain_kernel, ksize=ksize, pad=pad, width=w,
                   block_cfg=tuple(block_cfg), has_folded=has_folded,
                   mm_dtype=mm_dtype)
    scratch = ([pltpu.VMEM((scratch_rows, lane_w), jnp.float32)]
               if has_folded else [])
    vmem_bytes = int(min(max(2 * footprint(lane_w) + (4 << 20), 16 << 20),
                         128 << 20))

    out = pl.pallas_call(
        kern,
        out_shape=jax.ShapeDtypeStruct((nb, cout_p, lane_w), x_nchw.dtype),
        grid=(nb,),
        in_specs=[pl.BlockSpec((k2, 1, lane_w), lambda i: (0, 0, 0)),
                  pl.BlockSpec((1, c0_p, lane_w), lambda i: (i, 0, 0)),
                  *param_specs],
        out_specs=pl.BlockSpec((1, cout_p, lane_w), lambda i: (i, 0, 0)),
        scratch_shapes=scratch,
        compiler_params=pltpu.CompilerParams(
            dimension_semantics=("parallel",),
            vmem_limit_bytes=vmem_bytes),
    )(masks, xk, *param_arrays)

    if fold:
        out = out.reshape(cout_p, n, hw_pad).transpose(1, 0, 2)
    return out[:, :cout, :hw].reshape(n, cout, h, w)


# ----------------------------------------------------------------------------
# kernel_size == 1 branch: 1x1 conv -> BN -> ReLU (lane-dense, scale folded)
# ----------------------------------------------------------------------------
def _pw_bn_relu_kernel(x_ref, w_ref, b_ref, out_ref, *, mm_dtype):
    y = jnp.dot(w_ref[...].astype(mm_dtype), x_ref[0].astype(mm_dtype),
                preferred_element_type=jnp.float32)            # (Coutp, L)
    y = jnp.maximum(y + b_ref[...].astype(jnp.float32), 0.0)
    out_ref[0] = y.astype(out_ref.dtype)


def _run_pw_block(x_nchw, blk, mm_dtype, fold_opt):
    n, cin, h, w = x_nchw.shape
    hw = h * w
    hw_pad = _round_up(hw, 128)
    cin_p, cout_p, cout = blk["cin_p"], blk["cout_p"], blk["cout"]

    x = x_nchw.reshape(n, cin, hw)
    if cin_p != cin:
        x = jnp.pad(x, ((0, 0), (0, cin_p - cin), (0, 0)))
    if hw_pad != hw:
        x = jnp.pad(x, ((0, 0), (0, 0), (0, hw_pad - hw)))

    def footprint(lane_w):
        act_b = 4 * lane_w
        return 2 * cin_p * act_b + 2 * cout_p * act_b + 4 * cout_p * act_b

    fold = (footprint(n * hw_pad) <= (24 << 20)) if fold_opt is None else bool(fold_opt)
    if fold:
        lane_w, nb = n * hw_pad, 1
        xk = jnp.transpose(x, (1, 0, 2)).reshape(1, cin_p, lane_w)
    else:
        lane_w, nb = hw_pad, n
        xk = x
    vmem_bytes = int(min(max(2 * footprint(lane_w) + (4 << 20), 16 << 20),
                         128 << 20))
    out = pl.pallas_call(
        partial(_pw_bn_relu_kernel, mm_dtype=mm_dtype),
        out_shape=jax.ShapeDtypeStruct((nb, cout_p, lane_w), x_nchw.dtype),
        grid=(nb,),
        in_specs=[pl.BlockSpec((1, cin_p, lane_w), lambda i: (i, 0, 0)),
                  pl.BlockSpec((cout_p, cin_p), lambda i: (0, 0)),
                  pl.BlockSpec((cout_p, 1), lambda i: (0, 0))],
        out_specs=pl.BlockSpec((1, cout_p, lane_w), lambda i: (i, 0, 0)),
        compiler_params=pltpu.CompilerParams(
            dimension_semantics=("parallel",),
            vmem_limit_bytes=vmem_bytes),
    )(xk, blk["w_fold_p"], blk["bias_col_p"])
    if fold:
        out = out.reshape(cout_p, n, hw_pad).transpose(1, 0, 2)
    return out[:, :cout, :hw].reshape(n, cout, h, w)


# ----------------------------------------------------------------------------
# General fallback (stride != 1 or non-"same" padding): un-fused NHWC version.
# TODO(synk): rework in the lane-dense channel-major layout with in-kernel
# padding + strided store; BiFPN only uses the stride=1 "same" configuration.
# ----------------------------------------------------------------------------
def _dsep_general_kernel(xp_ref, dw_ref, pw_ref, sc_ref, bi_ref, out_ref,
                         *, ksize, stride, hout, wout, relu_in):
    xp = xp_ref[0].astype(jnp.float32)                    # (Hp, Wp, Cin), padded
    if relu_in:
        xp = jnp.maximum(xp, 0.0)
    cin = xp.shape[-1]
    cout = pw_ref.shape[-1]
    dw = dw_ref[...].astype(jnp.float32)
    acc = jnp.zeros((hout, wout, cin), jnp.float32)
    for kh in range(ksize):
        for kw in range(ksize):
            if stride == 1:
                patch = xp[kh:kh + hout, kw:kw + wout, :]
            else:
                patch = lax.slice(
                    xp, (kh, kw, 0),
                    (kh + (hout - 1) * stride + 1,
                     kw + (wout - 1) * stride + 1, cin),
                    (stride, stride, 1))
            acc = acc + patch * dw[kh, kw, :].reshape(1, 1, cin)
    y = jnp.dot(acc.reshape(hout * wout, cin), pw_ref[...].astype(jnp.float32),
                preferred_element_type=jnp.float32)
    y = y * sc_ref[0] + bi_ref[0]
    out_ref[0] = y.reshape(hout, wout, cout).astype(out_ref.dtype)


def _run_dsep_general(x_nhwc, blk, ksize, stride, padding):
    n, h, w, cin = x_nhwc.shape
    cout = blk["cout"]
    hout = (h + 2 * padding - ksize) // stride + 1
    wout = (w + 2 * padding - ksize) // stride + 1
    xp = jnp.pad(x_nhwc, ((0, 0), (padding, padding), (padding, padding), (0, 0)))
    hp, wp = xp.shape[1], xp.shape[2]
    sc = blk["scale"].reshape(1, cout)
    bi = blk["bias"].reshape(1, cout)
    kern = partial(_dsep_general_kernel, ksize=ksize, stride=stride,
                   hout=hout, wout=wout, relu_in=blk["relu_in"])
    return pl.pallas_call(
        kern,
        out_shape=jax.ShapeDtypeStruct((n, hout, wout, cout), x_nhwc.dtype),
        grid=(n,),
        in_specs=[
            pl.BlockSpec((1, hp, wp, cin), lambda i: (i, 0, 0, 0)),
            pl.BlockSpec((ksize, ksize, cin), lambda i: (0, 0, 0)),
            pl.BlockSpec((cin, cout), lambda i: (0, 0)),
            pl.BlockSpec((1, cout), lambda i: (0, 0)),
            pl.BlockSpec((1, cout), lambda i: (0, 0)),
        ],
        out_specs=pl.BlockSpec((1, hout, wout, cout), lambda i: (i, 0, 0, 0)),
        compiler_params=pltpu.CompilerParams(dimension_semantics=("parallel",)),
    )(xp, blk["dw"], blk["pw"], sc, bi)


# ----------------------------------------------------------------------------
# Module wrapper with deterministic synthetic parameters
# ----------------------------------------------------------------------------
class DepthConvBlockPallas:
    def __init__(self, in_channels, out_channels, kernel_size=1, stride=1,
                 padding=0, depth=1, key=None, dw_mode=None,
                 matmul_dtype=jnp.float32, fold_batch=None):
        if key is None:
            key = jax.random.PRNGKey(0)
        self.kernel_size = kernel_size
        self.stride = stride
        self.padding = padding
        self.matmul_dtype = matmul_dtype     # bf16 possible when MXU/DMA-bound
        self.fold_batch = fold_batch         # None = auto footprint heuristic
        self.blocks = []
        eps = 1e-5
        ks = kernel_size

        def bn_fold(kk, c):
            s1, s2, s3, s4 = jax.random.split(kk, 4)
            gamma = 1.0 + 0.1 * jax.random.normal(s1, (c,), jnp.float32)
            beta = 0.1 * jax.random.normal(s2, (c,), jnp.float32)
            mean = 0.1 * jax.random.normal(s3, (c,), jnp.float32)
            var = 0.5 + 0.1 * jnp.abs(jax.random.normal(s4, (c,), jnp.float32))
            scale = gamma / jnp.sqrt(var + eps)          # eval-mode BN
            bias = beta - mean * scale
            return scale, bias

        if kernel_size == 1:
            k1, k2 = jax.random.split(key)
            pw = jax.random.normal(k1, (in_channels, out_channels),
                                   jnp.float32) / math.sqrt(in_channels)
            scale, bias = bn_fold(k2, out_channels)
            cin_p = _round_up(in_channels, 8)
            cout_p = _round_up(out_channels, 8)
            w_fold = pw.T * scale[:, None]                       # (Cout, Cin)
            w_fold_p = jnp.zeros((cout_p, cin_p), jnp.float32
                                 ).at[:out_channels, :in_channels].set(w_fold)
            bias_col_p = jnp.zeros((cout_p, 1), jnp.float32
                                   ).at[:out_channels, 0].set(bias)
            self.blocks.append(dict(
                kind="pw", pw=pw, scale=scale, bias=bias,
                cin=in_channels, cout=out_channels, cin_p=cin_p, cout_p=cout_p,
                w_fold_p=w_fold_p, bias_col_p=bias_col_p))
            return

        keys = jax.random.split(key, depth)
        cin = in_channels
        for i in range(depth):
            cout = out_channels
            k1, k2, k3 = jax.random.split(keys[i], 3)
            dw = jax.random.normal(k1, (ks, ks, cin), jnp.float32) / float(ks)
            pw = jax.random.normal(k2, (cin, cout), jnp.float32) / math.sqrt(cin)
            scale, bias = bn_fold(k3, cout)
            cin_p, cout_p = _round_up(cin, 8), _round_up(cout, 8)
            mode = dw_mode if dw_mode is not None else (
                "split" if cin_p >= 64 else "folded")
            bias_col_p = jnp.zeros((cout_p, 1), jnp.float32
                                   ).at[:cout, 0].set(bias)
            blk = dict(kind="dsep", dw=dw, pw=pw, scale=scale, bias=bias,
                       relu_in=(i > 0), mode=mode,
                       cin=cin, cout=cout, cin_p=cin_p, cout_p=cout_p,
                       bias_col_p=bias_col_p)
            if mode == "folded":
                # Fold depthwise tap * pointwise * BN-scale into one stacked
                # (Coutp, k*k*Cinp) weight for the single-matmul kernel path.
                wt = (dw[:, :, :, None] * pw[None, None, :, :]
                      * scale[None, None, None, :])              # (k,k,Cin,Cout)
                wt = jnp.transpose(wt, (0, 1, 3, 2)).reshape(ks * ks, cout, cin)
                wstack = jnp.zeros((cout_p, ks * ks * cin_p), jnp.float32)
                for t in range(ks * ks):
                    wstack = wstack.at[:cout,
                                       t * cin_p:t * cin_p + cin].set(wt[t])
                blk["wstack_p"] = wstack
            else:
                blk["dwcol_p"] = jnp.zeros((ks * ks, cin_p, 1), jnp.float32
                                           ).at[:, :cin, 0].set(
                                               dw.reshape(ks * ks, cin))
                blk["wpw_p"] = jnp.zeros((cout_p, cin_p), jnp.float32
                                         ).at[:cout, :cin].set(
                                             pw.T * scale[:, None])
            self.blocks.append(blk)
            cin = cout

    def __call__(self, x_nchw):
        if self.kernel_size == 1:
            return _run_pw_block(x_nchw, self.blocks[0], self.matmul_dtype,
                                 self.fold_batch)
        if self.stride == 1 and 2 * self.padding == self.kernel_size - 1:
            return _run_fused_chain(x_nchw, self.blocks, self.kernel_size,
                                    self.padding, self.matmul_dtype,
                                    self.fold_batch)
        y = jnp.transpose(x_nchw, (0, 2, 3, 1))
        for blk in self.blocks:
            y = _run_dsep_general(y, blk, self.kernel_size, self.stride,
                                  self.padding)
        return jnp.transpose(y, (0, 3, 1, 2))


# ----------------------------------------------------------------------------
# Pure-JAX reference (mirrors the PyTorch forward exactly, eval-mode BN)
# ----------------------------------------------------------------------------
def depthconvblock_ref(x_nchw, module):
    y = x_nchw
    for blk in module.blocks:
        sc = blk["scale"][None, :, None, None]
        bi = blk["bias"][None, :, None, None]
        if module.kernel_size == 1:
            w = jnp.transpose(blk["pw"], (1, 0))[:, :, None, None]
            y = lax.conv_general_dilated(y, w, (1, 1), 'VALID',
                                         dimension_numbers=('NCHW', 'OIHW', 'NCHW'))
            y = jnp.maximum(y * sc + bi, 0.0)
        else:
            if blk["relu_in"]:
                y = jnp.maximum(y, 0.0)
            c = y.shape[1]
            dwk = jnp.transpose(blk["dw"], (2, 0, 1))[:, None, :, :]
            pad = [(module.padding, module.padding)] * 2
            y = lax.conv_general_dilated(y, dwk, (module.stride, module.stride),
                                         pad,
                                         dimension_numbers=('NCHW', 'OIHW', 'NCHW'),
                                         feature_group_count=c)
            pwk = jnp.transpose(blk["pw"], (1, 0))[:, :, None, None]
            y = lax.conv_general_dilated(y, pwk, (1, 1), 'VALID',
                                         dimension_numbers=('NCHW', 'OIHW', 'NCHW'))
            y = y * sc + bi
    return y


# ----------------------------------------------------------------------------
if __name__ == "__main__":
    root = jax.random.PRNGKey(0)
    kx, kp1, kp2 = jax.random.split(root, 3)

    x = jax.random.normal(kx, (2, 4, 16, 16), jnp.float32)   # NCHW, like PyTorch

    # Depthwise-separable chain (k=3, depth=2): folded stacked-tap mode with
    # batch folded into the lane axis (one grid step, single matmul per block).
    m1 = DepthConvBlockPallas(4, 8, kernel_size=3, stride=1, padding=1,
                              depth=2, key=kp1)
    out1 = jax.block_until_ready(m1(x))
    ref1 = depthconvblock_ref(x, m1)
    assert out1.shape == (2, 8, 16, 16)
    assert jnp.allclose(out1, ref1, rtol=1e-4, atol=1e-4), "dsep folded mismatch"

    # Same weights, but the "split" (VPU depthwise + single MXU pointwise)
    # production-channel path and the per-batch grid path.
    m1b = DepthConvBlockPallas(4, 8, kernel_size=3, stride=1, padding=1,
                               depth=2, key=kp1, dw_mode="split",
                               fold_batch=False)
    out1b = jax.block_until_ready(m1b(x))
    assert out1b.shape == (2, 8, 16, 16)
    assert jnp.allclose(out1b, ref1, rtol=1e-4, atol=1e-4), "dsep split mismatch"

    # 1x1 conv + BN + ReLU branch (kernel_size == 1).
    m2 = DepthConvBlockPallas(4, 8, kernel_size=1, key=kp2)
    out2 = jax.block_until_ready(m2(x))
    ref2 = depthconvblock_ref(x, m2)
    assert out2.shape == (2, 8, 16, 16)
    assert jnp.allclose(out2, ref2, rtol=1e-4, atol=1e-4), "1x1 branch mismatch"

    print("KERNEL_OK")
</pallas_src>

<mosaic_0001>
module attributes {stable_mosaic.version = 11 : i64} {
  func.func @_fused_chain_kernel(%arg0: i32, %arg1: memref<9x1x512xf32, #tpu.memory_space<vmem>>, %arg2: memref<1x8x512xf32, #tpu.memory_space<vmem>>, %arg3: memref<8x72xf32, #tpu.memory_space<vmem>>, %arg4: memref<8x1xf32, #tpu.memory_space<vmem>>, %arg5: memref<8x72xf32, #tpu.memory_space<vmem>>, %arg6: memref<8x1xf32, #tpu.memory_space<vmem>>, %arg7: memref<1x8x512xf32, #tpu.memory_space<vmem>>, %arg8: memref<72x512xf32, #tpu.memory_space<vmem>>) attributes {dimension_semantics = [#tpu.dimension_semantics<parallel>], iteration_bounds = array<i64: 1>, scalar_prefetch = 0 : i64, scratch_operands = 1 : i64, tpu.core_type = #tpu.core_type<tc>, window_params = [{pipeline_mode = #tpu.pipeline_mode<synchronous>, transform_indices = @transform_0, window_bounds = array<i64: 9, 1, 512>}, {transform_indices = @transform_1, window_bounds = array<i64: 1, 8, 512>}, {pipeline_mode = #tpu.pipeline_mode<synchronous>, transform_indices = @transform_2, window_bounds = array<i64: 8, 72>}, {pipeline_mode = #tpu.pipeline_mode<synchronous>, transform_indices = @transform_3, window_bounds = array<i64: 8, 1>}, {pipeline_mode = #tpu.pipeline_mode<synchronous>, transform_indices = @transform_4, window_bounds = array<i64: 8, 72>}, {pipeline_mode = #tpu.pipeline_mode<synchronous>, transform_indices = @transform_5, window_bounds = array<i64: 8, 1>}, {transform_indices = @transform_6, window_bounds = array<i64: 1, 8, 512>}]} {
    %c0 = arith.constant 0 : index
    %c0_0 = arith.constant 0 : index
    %c0_1 = arith.constant 0 : index
    %0 = vector.load %arg2[%c0, %c0_0, %c0_1] : memref<1x8x512xf32, #tpu.memory_space<vmem>>, vector<1x8x512xf32>
    %1 = vector.shape_cast %0 : vector<1x8x512xf32> to vector<8x512xf32>
    %c17_i32 = arith.constant 17 : i32
    %2 = tpu.dynamic_rotate %1 by %c17_i32 dim 1 : vector<8x512xf32>, i32 -> vector<8x512xf32>
    %c0_2 = arith.constant 0 : index
    %c0_3 = arith.constant 0 : index
    %c0_4 = arith.constant 0 : index
    %3 = vector.load %arg1[%c0_2, %c0_3, %c0_4] : memref<9x1x512xf32, #tpu.memory_space<vmem>>, vector<1x1x512xf32>
    %4 = vector.shape_cast %3 : vector<1x1x512xf32> to vector<1x512xf32>
    %5 = vector.broadcast %4 : vector<1x512xf32> to vector<8x512xf32>
    %6 = arith.mulf %2, %5 : vector<8x512xf32>
    %c0_5 = arith.constant 0 : index
    %c0_6 = arith.constant 0 : index
    %7 = vector.load %arg8[%c0_5, %c0_6] : memref<72x512xf32, #tpu.memory_space<vmem>>, vector<8x512xf32>
    tpu.vector_store %arg8[%c0_5, %c0_6], %6 {strides = array<i32>} : memref<72x512xf32, #tpu.memory_space<vmem>>, vector<8x512xf32>,
    %c16_i32 = arith.constant 16 : i32
    %8 = tpu.dynamic_rotate %1 by %c16_i32 dim 1 : vector<8x512xf32>, i32 -> vector<8x512xf32>
    %c1 = arith.constant 1 : index
    %c0_7 = arith.constant 0 : index
    %c0_8 = arith.constant 0 : index
    %9 = vector.load %arg1[%c1, %c0_7, %c0_8] : memref<9x1x512xf32, #tpu.memory_space<vmem>>, vector<1x1x512xf32>
    %10 = vector.shape_cast %9 : vector<1x1x512xf32> to vector<1x512xf32>
    %11 = vector.broadcast %10 : vector<1x512xf32> to vector<8x512xf32>
    %12 = arith.mulf %8, %11 : vector<8x512xf32>
    %c8 = arith.constant 8 : index
    %c0_9 = arith.constant 0 : index
    %13 = vector.load %arg8[%c8, %c0_9] : memref<72x512xf32, #tpu.memory_space<vmem>>, vector<8x512xf32>
    tpu.vector_store %arg8[%c8, %c0_9], %12 {strides = array<i32>} : memref<72x512xf32, #tpu.memory_space<vmem>>, vector<8x512xf32>,
    %c15_i32 = arith.constant 15 : i32
    %14 = tpu.dynamic_rotate %1 by %c15_i32 dim 1 : vector<8x512xf32>, i32 -> vector<8x512xf32>
    %c2 = arith.constant 2 : index
    %c0_10 = arith.constant 0 : index
    %c0_11 = arith.constant 0 : index
    %15 = vector.load %arg1[%c2, %c0_10, %c0_11] : memref<9x1x512xf32, #tpu.memory_space<vmem>>, vector<1x1x512xf32>
    %16 = vector.shape_cast %15 : vector<1x1x512xf32> to vector<1x512xf32>
    %17 = vector.broadcast %16 : vector<1x512xf32> to vector<8x512xf32>
    %18 = arith.mulf %14, %17 : vector<8x512xf32>
    %c16 = arith.constant 16 : index
    %c0_12 = arith.constant 0 : index
    %19 = vector.load %arg8[%c16, %c0_12] : memref<72x512xf32, #tpu.memory_space<vmem>>, vector<8x512xf32>
    tpu.vector_store %arg8[%c16, %c0_12], %18 {strides = array<i32>} : memref<72x512xf32, #tpu.memory_space<vmem>>, vector<8x512xf32>,
    %c1_i32 = arith.constant 1 : i32
    %20 = tpu.dynamic_rotate %1 by %c1_i32 dim 1 : vector<8x512xf32>, i32 -> vector<8x512xf32>
    %c3 = arith.constant 3 : index
    %c0_13 = arith.constant 0 : index
    %c0_14 = arith.constant 0 : index
    %21 = vector.load %arg1[%c3, %c0_13, %c0_14] : memref<9x1x512xf32, #tpu.memory_space<vmem>>, vector<1x1x512xf32>
    %22 = vector.shape_cast %21 : vector<1x1x512xf32> to vector<1x512xf32>
    %23 = vector.broadcast %22 : vector<1x512xf32> to vector<8x512xf32>
    %24 = arith.mulf %20, %23 : vector<8x512xf32>
    %c24 = arith.constant 24 : index
    %c0_15 = arith.constant 0 : index
    %25 = vector.load %arg8[%c24, %c0_15] : memref<72x512xf32, #tpu.memory_space<vmem>>, vector<8x512xf32>
    tpu.vector_store %arg8[%c24, %c0_15], %24 {strides = array<i32>} : memref<72x512xf32, #tpu.memory_space<vmem>>, vector<8x512xf32>,
    %c32 = arith.constant 32 : index
    %c0_16 = arith.constant 0 : index
    %26 = vector.load %arg8[%c32, %c0_16] : memref<72x512xf32, #tpu.memory_space<vmem>>, vector<8x512xf32>
    tpu.vector_store %arg8[%c32, %c0_16], %1 {strides = array<i32>} : memref<72x512xf32, #tpu.memory_space<vmem>>, vector<8x512xf32>,
    %c511_i32 = arith.constant 511 : i32
    %27 = tpu.dynamic_rotate %1 by %c511_i32 dim 1 : vector<8x512xf32>, i32 -> vector<8x512xf32>
    %c5 = arith.constant 5 : index
    %c0_17 = arith.constant 0 : index
    %c0_18 = arith.constant 0 : index
    %28 = vector.load %arg1[%c5, %c0_17, %c0_18] : memref<9x1x512xf32, #tpu.memory_space<vmem>>, vector<1x1x512xf32>
    %29 = vector.shape_cast %28 : vector<1x1x512xf32> to vector<1x512xf32>
    %30 = vector.broadcast %29 : vector<1x512xf32> to vector<8x512xf32>
    %31 = arith.mulf %27, %30 : vector<8x512xf32>
    %c40 = arith.constant 40 : index
    %c0_19 = arith.constant 0 : index
    %32 = vector.load %arg8[%c40, %c0_19] : memref<72x512xf32, #tpu.memory_space<vmem>>, vector<8x512xf32>
    tpu.vector_store %arg8[%c40, %c0_19], %31 {strides = array<i32>} : memref<72x512xf32, #tpu.memory_space<vmem>>, vector<8x512xf32>,
    %c497_i32 = arith.constant 497 : i32
    %33 = tpu.dynamic_rotate %1 by %c497_i32 dim 1 : vector<8x512xf32>, i32 -> vector<8x512xf32>
    %c6 = arith.constant 6 : index
    %c0_20 = arith.constant 0 : index
    %c0_21 = arith.constant 0 : index
    %34 = vector.load %arg1[%c6, %c0_20, %c0_21] : memref<9x1x512xf32, #tpu.memory_space<vmem>>, vector<1x1x512xf32>
    %35 = vector.shape_cast %34 : vector<1x1x512xf32> to vector<1x512xf32>
    %36 = vector.broadcast %35 : vector<1x512xf32> to vector<8x512xf32>
    %37 = arith.mulf %33, %36 : vector<8x512xf32>
    %c48 = arith.constant 48 : index
    %c0_22 = arith.constant 0 : index
    %38 = vector.load %arg8[%c48, %c0_22] : memref<72x512xf32, #tpu.memory_space<vmem>>, vector<8x512xf32>
    tpu.vector_store %arg8[%c48, %c0_22], %37 {strides = array<i32>} : memref<72x512xf32, #tpu.memory_space<vmem>>, vector<8x512xf32>,
    %c496_i32 = arith.constant 496 : i32
    %39 = tpu.dynamic_rotate %1 by %c496_i32 dim 1 : vector<8x512xf32>, i32 -> vector<8x512xf32>
    %c7 = arith.constant 7 : index
    %c0_23 = arith.constant 0 : index
    %c0_24 = arith.constant 0 : index
    %40 = vector.load %arg1[%c7, %c0_23, %c0_24] : memref<9x1x512xf32, #tpu.memory_space<vmem>>, vector<1x1x512xf32>
    %41 = vector.shape_cast %40 : vector<1x1x512xf32> to vector<1x512xf32>
    %42 = vector.broadcast %41 : vector<1x512xf32> to vector<8x512xf32>
    %43 = arith.mulf %39, %42 : vector<8x512xf32>
    %c56 = arith.constant 56 : index
    %c0_25 = arith.constant 0 : index
    %44 = vector.load %arg8[%c56, %c0_25] : memref<72x512xf32, #tpu.memory_space<vmem>>, vector<8x512xf32>
    tpu.vector_store %arg8[%c56, %c0_25], %43 {strides = array<i32>} : memref<72x512xf32, #tpu.memory_space<vmem>>, vector<8x512xf32>,
    %c495_i32 = arith.constant 495 : i32
    %45 = tpu.dynamic_rotate %1 by %c495_i32 dim 1 : vector<8x512xf32>, i32 -> vector<8x512xf32>
    %c8_26 = arith.constant 8 : index
    %c0_27 = arith.constant 0 : index
    %c0_28 = arith.constant 0 : index
    %46 = vector.load %arg1[%c8_26, %c0_27, %c0_28] : memref<9x1x512xf32, #tpu.memory_space<vmem>>, vector<1x1x512xf32>
    %47 = vector.shape_cast %46 : vector<1x1x512xf32> to vector<1x512xf32>
    %48 = vector.broadcast %47 : vector<1x512xf32> to vector<8x512xf32>
    %49 = arith.mulf %45, %48 : vector<8x512xf32>
    %c64 = arith.constant 64 : index
    %c0_29 = arith.constant 0 : index
    %50 = vector.load %arg8[%c64, %c0_29] : memref<72x512xf32, #tpu.memory_space<vmem>>, vector<8x512xf32>
    tpu.vector_store %arg8[%c64, %c0_29], %49 {strides = array<i32>} : memref<72x512xf32, #tpu.memory_space<vmem>>, vector<8x512xf32>,
    %c0_30 = arith.constant 0 : index
    %c0_31 = arith.constant 0 : index
    %51 = vector.load %arg8[%c0_30, %c0_31] : memref<72x512xf32, #tpu.memory_space<vmem>>, vector<72x512xf32>
    %c0_32 = arith.constant 0 : index
    %c0_33 = arith.constant 0 : index
    %52 = vector.load %arg3[%c0_32, %c0_33] : memref<8x72xf32, #tpu.memory_space<vmem>>, vector<8x72xf32>
    %cst = arith.constant dense<0.000000e+00> : vector<8x512xf32>
    %53 = tpu.matmul %52, %51, %cst {dimension_numbers = #tpu.dot_dimension_numbers<[1], [0], [0], [1], [0, 0, 1, 1], [], []>} : vector<8x72xf32>, vector<72x512xf32>, vector<8x512xf32> -> vector<8x512xf32>
    %c0_34 = arith.constant 0 : index
    %c0_35 = arith.constant 0 : index
    %54 = vector.load %arg4[%c0_34, %c0_35] : memref<8x1xf32, #tpu.memory_space<vmem>>, vector<8x1xf32>
    %55 = vector.broadcast %54 : vector<8x1xf32> to vector<8x512xf32>
    %56 = arith.addf %53, %55 : vector<8x512xf32>
    %cst_36 = arith.constant 0.000000e+00 : f32
    %57 = vector.broadcast %cst_36 : f32 to vector<8x512xf32>
    %58 = arith.maximumf %56, %57 : vector<8x512xf32>
    %c17_i32_37 = arith.constant 17 : i32
    %59 = tpu.dynamic_rotate %58 by %c17_i32_37 dim 1 : vector<8x512xf32>, i32 -> vector<8x512xf32>
    %c0_38 = arith.constant 0 : index
    %c0_39 = arith.constant 0 : index
    %c0_40 = arith.constant 0 : index
    %60 = vector.load %arg1[%c0_38, %c0_39, %c0_40] : memref<9x1x512xf32, #tpu.memory_space<vmem>>, vector<1x1x512xf32>
    %61 = vector.shape_cast %60 : vector<1x1x512xf32> to vector<1x512xf32>
    %62 = vector.broadcast %61 : vector<1x512xf32> to vector<8x512xf32>
    %63 = arith.mulf %59, %62 : vector<8x512xf32>
    %c0_41 = arith.constant 0 : index
    %c0_42 = arith.constant 0 : index
    %64 = vector.load %arg8[%c0_41, %c0_42] : memref<72x512xf32, #tpu.memory_space<vmem>>, vector<8x512xf32>
    tpu.vector_store %arg8[%c0_41, %c0_42], %63 {strides = array<i32>} : memref<72x512xf32, #tpu.memory_space<vmem>>, vector<8x512xf32>,
    %c16_i32_43 = arith.constant 16 : i32
    %65 = tpu.dynamic_rotate %58 by %c16_i32_43 dim 1 : vector<8x512xf32>, i32 -> vector<8x512xf32>
    %c1_44 = arith.constant 1 : index
    %c0_45 = arith.constant 0 : index
    %c0_46 = arith.constant 0 : index
    %66 = vector.load %arg1[%c1_44, %c0_45, %c0_46] : memref<9x1x512xf32, #tpu.memory_space<vmem>>, vector<1x1x512xf32>
    %67 = vector.shape_cast %66 : vector<1x1x512xf32> to vector<1x512xf32>
    %68 = vector.broadcast %67 : vector<1x512xf32> to vector<8x512xf32>
    %69 = arith.mulf %65, %68 : vector<8x512xf32>
    %c8_47 = arith.constant 8 : index
    %c0_48 = arith.constant 0 : index
    %70 = vector.load %arg8[%c8_47, %c0_48] : memref<72x512xf32, #tpu.memory_space<vmem>>, vector<8x512xf32>
    tpu.vector_store %arg8[%c8_47, %c0_48], %69 {strides = array<i32>} : memref<72x512xf32, #tpu.memory_space<vmem>>, vector<8x512xf32>,
    %c15_i32_49 = arith.constant 15 : i32
    %71 = tpu.dynamic_rotate %58 by %c15_i32_49 dim 1 : vector<8x512xf32>, i32 -> vector<8x512xf32>
    %c2_50 = arith.constant 2 : index
    %c0_51 = arith.constant 0 : index
    %c0_52 = arith.constant 0 : index
    %72 = vector.load %arg1[%c2_50, %c0_51, %c0_52] : memref<9x1x512xf32, #tpu.memory_space<vmem>>, vector<1x1x512xf32>
    %73 = vector.shape_cast %72 : vector<1x1x512xf32> to vector<1x512xf32>
    %74 = vector.broadcast %73 : vector<1x512xf32> to vector<8x512xf32>
    %75 = arith.mulf %71, %74 : vector<8x512xf32>
    %c16_53 = arith.constant 16 : index
    %c0_54 = arith.constant 0 : index
    %76 = vector.load %arg8[%c16_53, %c0_54] : memref<72x512xf32, #tpu.memory_space<vmem>>, vector<8x512xf32>
    tpu.vector_store %arg8[%c16_53, %c0_54], %75 {strides = array<i32>} : memref<72x512xf32, #tpu.memory_space<vmem>>, vector<8x512xf32>,
    %c1_i32_55 = arith.constant 1 : i32
    %77 = tpu.dynamic_rotate %58 by %c1_i32_55 dim 1 : vector<8x512xf32>, i32 -> vector<8x512xf32>
    %c3_56 = arith.constant 3 : index
    %c0_57 = arith.constant 0 : index
    %c0_58 = arith.constant 0 : index
    %78 = vector.load %arg1[%c3_56, %c0_57, %c0_58] : memref<9x1x512xf32, #tpu.memory_space<vmem>>, vector<1x1x512xf32>
    %79 = vector.shape_cast %78 : vector<1x1x512xf32> to vector<1x512xf32>
    %80 = vector.broadcast %79 : vector<1x512xf32> to vector<8x512xf32>
    %81 = arith.mulf %77, %80 : vector<8x512xf32>
    %c24_59 = arith.constant 24 : index
    %c0_60 = arith.constant 0 : index
    %82 = vector.load %arg8[%c24_59, %c0_60] : memref<72x512xf32, #tpu.memory_space<vmem>>, vector<8x512xf32>
    tpu.vector_store %arg8[%c24_59, %c0_60], %81 {strides = array<i32>} : memref<72x512xf32, #tpu.memory_space<vmem>>, vector<8x512xf32>,
    %c32_61 = arith.constant 32 : index
    %c0_62 = arith.constant 0 : index
    %83 = vector.load %arg8[%c32_61, %c0_62] : memref<72x512xf32, #tpu.memory_space<vmem>>, vector<8x512xf32>
    tpu.vector_store %arg8[%c32_61, %c0_62], %58 {strides = array<i32>} : memref<72x512xf32, #tpu.memory_space<vmem>>, vector<8x512xf32>,
    %c511_i32_63 = arith.constant 511 : i32
    %84 = tpu.dynamic_rotate %58 by %c511_i32_63 dim 1 : vector<8x512xf32>, i32 -> vector<8x512xf32>
    %c5_64 = arith.constant 5 : index
    %c0_65 = arith.constant 0 : index
    %c0_66 = arith.constant 0 : index
    %85 = vector.load %arg1[%c5_64, %c0_65, %c0_66] : memref<9x1x512xf32, #tpu.memory_space<vmem>>, vector<1x1x512xf32>
    %86 = vector.shape_cast %85 : vector<1x1x512xf32> to vector<1x512xf32>
    %87 = vector.broadcast %86 : vector<1x512xf32> to vector<8x512xf32>
    %88 = arith.mulf %84, %87 : vector<8x512xf32>
    %c40_67 = arith.constant 40 : index
    %c0_68 = arith.constant 0 : index
    %89 = vector.load %arg8[%c40_67, %c0_68] : memref<72x512xf32, #tpu.memory_space<vmem>>, vector<8x512xf32>
    tpu.vector_store %arg8[%c40_67, %c0_68], %88 {strides = array<i32>} : memref<72x512xf32, #tpu.memory_space<vmem>>, vector<8x512xf32>,
    %c497_i32_69 = arith.constant 497 : i32
    %90 = tpu.dynamic_rotate %58 by %c497_i32_69 dim 1 : vector<8x512xf32>, i32 -> vector<8x512xf32>
    %c6_70 = arith.constant 6 : index
    %c0_71 = arith.constant 0 : index
    %c0_72 = arith.constant 0 : index
    %91 = vector.load %arg1[%c6_70, %c0_71, %c0_72] : memref<9x1x512xf32, #tpu.memory_space<vmem>>, vector<1x1x512xf32>
    %92 = vector.shape_cast %91 : vector<1x1x512xf32> to vector<1x512xf32>
    %93 = vector.broadcast %92 : vector<1x512xf32> to vector<8x512xf32>
    %94 = arith.mulf %90, %93 : vector<8x512xf32>
    %c48_73 = arith.constant 48 : index
    %c0_74 = arith.constant 0 : index
    %95 = vector.load %arg8[%c48_73, %c0_74] : memref<72x512xf32, #tpu.memory_space<vmem>>, vector<8x512xf32>
    tpu.vector_store %arg8[%c48_73, %c0_74], %94 {strides = array<i32>} : memref<72x512xf32, #tpu.memory_space<vmem>>, vector<8x512xf32>,
    %c496_i32_75 = arith.constant 496 : i32
    %96 = tpu.dynamic_rotate %58 by %c496_i32_75 dim 1 : vector<8x512xf32>, i32 -> vector<8x512xf32>
    %c7_76 = arith.constant 7 : index
    %c0_77 = arith.constant 0 : index
    %c0_78 = arith.constant 0 : index
    %97 = vector.load %arg1[%c7_76, %c0_77, %c0_78] : memref<9x1x512xf32, #tpu.memory_space<vmem>>, vector<1x1x512xf32>
    %98 = vector.shape_cast %97 : vector<1x1x512xf32> to vector<1x512xf32>
    %99 = vector.broadcast %98 : vector<1x512xf32> to vector<8x512xf32>
    %100 = arith.mulf %96, %99 : vector<8x512xf32>
    %c56_79 = arith.constant 56 : index
    %c0_80 = arith.constant 0 : index
    %101 = vector.load %arg8[%c56_79, %c0_80] : memref<72x512xf32, #tpu.memory_space<vmem>>, vector<8x512xf32>
    tpu.vector_store %arg8[%c56_79, %c0_80], %100 {strides = array<i32>} : memref<72x512xf32, #tpu.memory_space<vmem>>, vector<8x512xf32>,
    %c495_i32_81 = arith.constant 495 : i32
    %102 = tpu.dynamic_rotate %58 by %c495_i32_81 dim 1 : vector<8x512xf32>, i32 -> vector<8x512xf32>
    %c8_82 = arith.constant 8 : index
    %c0_83 = arith.constant 0 : index
    %c0_84 = arith.constant 0 : index
    %103 = vector.load %arg1[%c8_82, %c0_83, %c0_84] : memref<9x1x512xf32, #tpu.memory_space<vmem>>, vector<1x1x512xf32>
    %104 = vector.shape_cast %103 : vector<1x1x512xf32> to vector<1x512xf32>
    %105 = vector.broadcast %104 : vector<1x512xf32> to vector<8x512xf32>
    %106 = arith.mulf %102, %105 : vector<8x512xf32>
    %c64_85 = arith.constant 64 : index
    %c0_86 = arith.constant 0 : index
    %107 = vector.load %arg8[%c64_85, %c0_86] : memref<72x512xf32, #tpu.memory_space<vmem>>, vector<8x512xf32>
    tpu.vector_store %arg8[%c64_85, %c0_86], %106 {strides = array<i32>} : memref<72x512xf32, #tpu.memory_space<vmem>>, vector<8x512xf32>,
    %c0_87 = arith.constant 0 : index
    %c0_88 = arith.constant 0 : index
    %108 = vector.load %arg8[%c0_87, %c0_88] : memref<72x512xf32, #tpu.memory_space<vmem>>, vector<72x512xf32>
    %c0_89 = arith.constant 0 : index
    %c0_90 = arith.constant 0 : index
    %109 = vector.load %arg5[%c0_89, %c0_90] : memref<8x72xf32, #tpu.memory_space<vmem>>, vector<8x72xf32>
    %cst_91 = arith.constant dense<0.000000e+00> : vector<8x512xf32>
    %110 = tpu.matmul %109, %108, %cst_91 {dimension_numbers = #tpu.dot_dimension_numbers<[1], [0], [0], [1], [0, 0, 1, 1], [], []>} : vector<8x72xf32>, vector<72x512xf32>, vector<8x512xf32> -> vector<8x512xf32>
    %c0_92 = arith.constant 0 : index
    %c0_93 = arith.constant 0 : index
    %111 = vector.load %arg6[%c0_92, %c0_93] : memref<8x1xf32, #tpu.memory_space<vmem>>, vector<8x1xf32>
    %112 = vector.broadcast %111 : vector<8x1xf32> to vector<8x512xf32>
    %113 = arith.addf %110, %112 : vector<8x512xf32>
    %c0_94 = arith.constant 0 : index
    %c0_95 = arith.constant 0 : index
    %c0_96 = arith.constant 0 : index
    %114 = vector.load %arg7[%c0_94, %c0_95, %c0_96] : memref<1x8x512xf32, #tpu.memory_space<vmem>>, vector<1x8x512xf32>
    %115 = vector.shape_cast %114 : vector<1x8x512xf32> to vector<8x512xf32>
    %116 = vector.shape_cast %113 : vector<8x512xf32> to vector<1x8x512xf32>
    tpu.vector_store %arg7[%c0_94, %c0_95, %c0_96], %116 {strides = array<i32>} : memref<1x8x512xf32, #tpu.memory_space<vmem>>, vector<1x8x512xf32>,
    return
  }
  func.func @transform_0(%arg0: i32) -> (i32, i32, i32) {
    %c0_i32 = arith.constant 0 : i32
    %c0_i32_0 = arith.constant 0 : i32
    %c0_i32_1 = arith.constant 0 : i32
    %c0_i32_2 = arith.constant 0 : i32
    return %c0_i32, %c0_i32_0, %c0_i32_1 : i32, i32, i32
  }
  func.func @transform_1(%arg0: i32) -> (i32, i32, i32) {
    %c0_i32 = arith.constant 0 : i32
    %c0_i32_0 = arith.constant 0 : i32
    %c0_i32_1 = arith.constant 0 : i32
    return %arg0, %c0_i32, %c0_i32_0 : i32, i32, i32
  }
  func.func @transform_2(%arg0: i32) -> (i32, i32) {
    %c0_i32 = arith.constant 0 : i32
    %c0_i32_0 = arith.constant 0 : i32
    %c0_i32_1 = arith.constant 0 : i32
    return %c0_i32, %c0_i32_0 : i32, i32
  }
  func.func @transform_3(%arg0: i32) -> (i32, i32) {
    %c0_i32 = arith.constant 0 : i32
    %c0_i32_0 = arith.constant 0 : i32
    %c0_i32_1 = arith.constant 0 : i32
    return %c0_i32, %c0_i32_0 : i32, i32
  }
  func.func @transform_4(%arg0: i32) -> (i32, i32) {
    %c0_i32 = arith.constant 0 : i32
    %c0_i32_0 = arith.constant 0 : i32
    %c0_i32_1 = arith.constant 0 : i32
    return %c0_i32, %c0_i32_0 : i32, i32
  }
  func.func @transform_5(%arg0: i32) -> (i32, i32) {
    %c0_i32 = arith.constant 0 : i32
    %c0_i32_0 = arith.constant 0 : i32
    %c0_i32_1 = arith.constant 0 : i32
    return %c0_i32, %c0_i32_0 : i32, i32
  }
  func.func @transform_6(%arg0: i32) -> (i32, i32, i32) {
    %c0_i32 = arith.constant 0 : i32
    %c0_i32_0 = arith.constant 0 : i32
    %c0_i32_1 = arith.constant 0 : i32
    return %arg0, %c0_i32, %c0_i32_0 : i32, i32, i32
  }
}

</mosaic_0001>

<llo_original>
// kernel: tpu_custom_call.1
$region0: #{tpu_custom_call.1}
  #allocation0 [shape = 'u32[]', space=smem, size = 0x4, offset = 0x4, fixed_abs, tag = 'smem constant byte address 0x4 - core index']
  #allocation1 [shape = 'u32[144,128]{1,0:T(1,128)}', space=vmem, size = 0x12000, scoped, tag = 'internal scratch']
  #allocation2 [shape = 'f32[72,512]{1,0:T(8,128)}', space=vmem, size = 0x24000, scoped, tag = 'scratch operand']
  %s0 = inlined_call_operand.hbm [shape: f32[9,1,512], index: 0, kind: input, shape index: {}]
  %s1 = inlined_call_operand.hbm [shape: f32[1,8,512], index: 1, kind: input, shape index: {}]
  %s2 = inlined_call_operand.vmem [shape: f32[8,72], index: 2, kind: input, shape index: {}]
  %s3 = inlined_call_operand.vmem [shape: f32[8,1], index: 3, kind: input, shape index: {}]
  %s4 = inlined_call_operand.vmem [shape: f32[8,72], index: 4, kind: input, shape index: {}]
  %s5 = inlined_call_operand.vmem [shape: f32[8,1], index: 5, kind: input, shape index: {}]
  %s6 = inlined_call_operand.hbm [shape: f32[1,8,512], index: 6, kind: output, shape index: {}]
  %s7 = sld [smem:[#allocation0]]
  $region42: #{tpu_custom_call.1} parent=0
    _
  %s9 = ssub.s32 1, %s7
  %s10 = scalar_select 0, %s9, %s7
  $region1: #{tpu_custom_call.1} parent=0
    #allocation3 [shape = 'u8[18432]{0}', space=vmem, size = 0x4800, scoped, tag = 'input window, operand 0, single buffered']
    #allocation4 [shape = 's32[1]{0}', space=sflag, size = 0x4, scoped, tag = 'scoped memory for tpu_custom_call.1']
    #allocation5 [shape = 's32[1]{0}', space=sflag, size = 0x4, scoped, tag = 'scoped memory for tpu_custom_call.1']
    #allocation6 [shape = 'u8[16384]{0}', space=vmem, size = 0x4000, scoped, tag = 'input window, operand 1, single buffered']
    #allocation7 [shape = 's32[1]{0}', space=sflag, size = 0x4, scoped, tag = 'scoped memory for tpu_custom_call.1']
    #allocation8 [shape = 'u8[16384]{0}', space=vmem, size = 0x4000, scoped, tag = 'output window, operand 0, single buffered']
    %11 = vsyncpa [#allocation4], 0
    %12 = vsyncpa [#allocation7], 0
    %13 = vsyncpa [#allocation5], 0
    // Predicated region
    $region2: #{tpu_custom_call.1} parent=1 // pred_check
      _
    $region3: #{tpu_custom_call.1} parent=1 // pred_check_branch
      %15 = sbr.rel (0) target = $region5
    $region4: #{tpu_custom_call.1} parent=1 // pred_region
      %s17 = ssub.s32 576, 576
      %18 = vsyncadd [#allocation4], %s17
      %s19 = sshll.u32 [#allocation3], 4
      %s20 = int_to_ptr.vmem [resolvable:$true] %s19
      %25 = dma.hbm_to_vmem [thread:$0]  %s0, 576, %s20, [#allocation4], 64, 64, 4
    $region5: #{tpu_custom_call.1} parent=1 // pred_fallthru
      _
    // Predicated region
    $region6: #{tpu_custom_call.1} parent=1 // pred_check
      _
    $region7: #{tpu_custom_call.1} parent=1 // pred_check_branch
      %27 = sbr.rel (0) target = $region9
    $region8: #{tpu_custom_call.1} parent=1 // pred_region
      %s29 = ssub.s32 512, 512
      %30 = vsyncadd [#allocation7], %s29
      %s32 = sshll.u32 [#allocation6], 4
      %s33 = int_to_ptr.vmem [resolvable:$true] %s32
      %35 = dma.hbm_to_vmem [thread:$0]  %s1, 512, %s33, [#allocation7]
    $region9: #{tpu_custom_call.1} parent=1 // pred_fallthru
      _
    // Predicated region
    $region10: #{tpu_custom_call.1} parent=1 // pred_check
      _
    $region11: #{tpu_custom_call.1} parent=1 // pred_check_branch
      %37 = sbr.rel (0) target = $region13
    $region12: #{tpu_custom_call.1} parent=1 // pred_region
      _
    $region13: #{tpu_custom_call.1} parent=1 // pred_fallthru
      _
    // Predicated region
    $region14: #{tpu_custom_call.1} parent=1 // pred_check
      _
    $region15: #{tpu_custom_call.1} parent=1 // pred_check_branch
      %39 = sbr.rel (0) target = $region17
    $region16: #{tpu_custom_call.1} parent=1 // pred_region
      _
    $region17: #{tpu_custom_call.1} parent=1 // pred_fallthru
      _
    // Predicated region
    $region18: #{tpu_custom_call.1} parent=1 // pred_check
      _
    $region19: #{tpu_custom_call.1} parent=1 // pred_check_branch
      %41 = sbr.rel (0) target = $region21
    $region20: #{tpu_custom_call.1} parent=1 // pred_region
      _
    $region21: #{tpu_custom_call.1} parent=1 // pred_fallthru
      _
    // Predicated region
    $region22: #{tpu_custom_call.1} parent=1 // pred_check
      _
    $region23: #{tpu_custom_call.1} parent=1 // pred_check_branch
      %43 = sbr.rel (0) target = $region25
    $region24: #{tpu_custom_call.1} parent=1 // pred_region
      _
    $region25: #{tpu_custom_call.1} parent=1 // pred_fallthru
      _
    // Predicated region
    $region26: #{tpu_custom_call.1} parent=1 // pred_check
      _
    $region27: #{tpu_custom_call.1} parent=1 // pred_check_branch
      %45 = sbr.rel (0) target = $region29
    $region28: #{tpu_custom_call.1} parent=1 // pred_region
      %46 = dma.done [#allocation4], 576
    $region29: #{tpu_custom_call.1} parent=1 // pred_fallthru
      _
    // Predicated region
    $region30: #{tpu_custom_call.1} parent=1 // pred_check
      _
    $region31: #{tpu_custom_call.1} parent=1 // pred_check_branch
      %48 = sbr.rel (0) target = $region33
    $region32: #{tpu_custom_call.1} parent=1 // pred_region
      %49 = dma.done [#allocation7], 512
    $region33: #{tpu_custom_call.1} parent=1 // pred_fallthru
      _
    %v50 = vld [vmem:[#allocation6] sm:$0xff]
    %v51 = vld [vmem:[#allocation6 + $0x8] sm:$0xff]
    %v52 = vld [vmem:[#allocation6 + $0x10] sm:$0xff]
    %v53 = vld [vmem:[#allocation6 + $0x18] sm:$0xff]
    %54 = vrot.lane.b32.xlu0 %v50, 17
    %v55 = vpop.permute.xlu0 %54
    %56 = vrot.lane.b32.xlu0 %v51, 17
    %v57 = vpop.permute.xlu0 %56
    %58 = vrot.lane.b32.xlu0 %v52, 17
    %v59 = vpop.permute.xlu0 %58
    %60 = vrot.lane.b32.xlu0 %v53, 17
    %v61 = vpop.permute.xlu0 %60
    %v62 = vlaneseq
    %v63 = vand.u32 %v62, 127
    %vm64 = vcmp.lt.s32.totalorder %v63, 17
    %v65 = vsel %vm64, %v59, %v61
    %v66 = vsel %vm64, %v57, %v59
    %v67 = vsel %vm64, %v55, %v57
    %v68 = vsel %vm64, %v61, %v55
    %v69 = vld [vmem:[#allocation3] sm:$0xf]
    %v71 = vlaneseq
    %v72 = vshrl.u32 %v71, 7
    %v73 = vsub.s32 0, %v72
    %v74 = vrot.slane %v69, %v73
    %v75 = vlaneseq
    %v76 = vshrl.u32 %v75, 7
    %v77 = vsub.s32 1, %v76
    %v78 = vrot.slane %v69, %v77
    %v79 = vlaneseq
    %v80 = vshrl.u32 %v79, 7
    %v81 = vsub.s32 2, %v80
    %v82 = vrot.slane %v69, %v81
    %v83 = vlaneseq
    %v84 = vshrl.u32 %v83, 7
    %v85 = vsub.s32 3, %v84
    %v86 = vrot.slane %v69, %v85
    %v91 = vmul.f32 %v68, %v74
    %v92 = vmul.f32 %v67, %v78
    %v93 = vmul.f32 %v66, %v82
    %v94 = vmul.f32 %v65, %v86
    %95 = vst [vmem:[#allocation2] sm:$0xff] %v91
    %96 = vst [vmem:[#allocation2 + $0x8] sm:$0xff] %v92
    %97 = vst [vmem:[#allocation2 + $0x10] sm:$0xff] %v93
    %98 = vst [vmem:[#allocation2 + $0x18] sm:$0xff] %v94
    %99 = vrot.lane.b32.xlu0 %v50, 16
    %v100 = vpop.permute.xlu0 %99
    %101 = vrot.lane.b32.xlu0 %v51, 16
    %v102 = vpop.permute.xlu0 %101
    %103 = vrot.lane.b32.xlu0 %v52, 16
    %v104 = vpop.permute.xlu0 %103
    %105 = vrot.lane.b32.xlu0 %v53, 16
    %v106 = vpop.permute.xlu0 %105
    %vm107 = vcmp.lt.s32.totalorder %v63, 16
    %v108 = vsel %vm107, %v104, %v106
    %v109 = vsel %vm107, %v102, %v104
    %v110 = vsel %vm107, %v100, %v102
    %v111 = vsel %vm107, %v106, %v100
    %s112 = scalar_lea.vmem [#allocation3], 4
    %v113 = vld [vmem:[%s112] sm:$0xf]
    %v115 = vlaneseq
    %v116 = vshrl.u32 %v115, 7
    %v117 = vsub.s32 0, %v116
    %v118 = vrot.slane %v113, %v117
    %v119 = vlaneseq
    %v120 = vshrl.u32 %v119, 7
    %v121 = vsub.s32 1, %v120
    %v122 = vrot.slane %v113, %v121
    %v123 = vlaneseq
    %v124 = vshrl.u32 %v123, 7
    %v125 = vsub.s32 2, %v124
    %v126 = vrot.slane %v113, %v125
    %v127 = vlaneseq
    %v128 = vshrl.u32 %v127, 7
    %v129 = vsub.s32 3, %v128
    %v130 = vrot.slane %v113, %v129
    %v135 = vmul.f32 %v111, %v118
    %v136 = vmul.f32 %v110, %v122
    %v137 = vmul.f32 %v109, %v126
    %v138 = vmul.f32 %v108, %v130
    %139 = vst [vmem:[#allocation2 + $0x20] sm:$0xff] %v135
    %140 = vst [vmem:[#allocation2 + $0x28] sm:$0xff] %v136
    %141 = vst [vmem:[#allocation2 + $0x30] sm:$0xff] %v137
    %142 = vst [vmem:[#allocation2 + $0x38] sm:$0xff] %v138
    %143 = vrot.lane.b32.xlu0 %v50, 15
    %v144 = vpop.permute.xlu0 %143
    %145 = vrot.lane.b32.xlu0 %v51, 15
    %v146 = vpop.permute.xlu0 %145
    %147 = vrot.lane.b32.xlu0 %v52, 15
    %v148 = vpop.permute.xlu0 %147
    %149 = vrot.lane.b32.xlu0 %v53, 15
    %v150 = vpop.permute.xlu0 %149
    %vm151 = vcmp.lt.s32.totalorder %v63, 15
    %v152 = vsel %vm151, %v148, %v150
    %v153 = vsel %vm151, %v146, %v148
    %v154 = vsel %vm151, %v144, %v146
    %v155 = vsel %vm151, %v150, %v144
    %s156 = scalar_lea.vmem [#allocation3], 8
    %v157 = vld [vmem:[%s156] sm:$0xf]
    %v159 = vlaneseq
    %v160 = vshrl.u32 %v159, 7
    %v161 = vsub.s32 0, %v160
    %v162 = vrot.slane %v157, %v161
    %v163 = vlaneseq
    %v164 = vshrl.u32 %v163, 7
    %v165 = vsub.s32 1, %v164
    %v166 = vrot.slane %v157, %v165
    %v167 = vlaneseq
    %v168 = vshrl.u32 %v167, 7
    %v169 = vsub.s32 2, %v168
    %v170 = vrot.slane %v157, %v169
    %v171 = vlaneseq
    %v172 = vshrl.u32 %v171, 7
    %v173 = vsub.s32 3, %v172
    %v174 = vrot.slane %v157, %v173
    %v179 = vmul.f32 %v155, %v162
    %v180 = vmul.f32 %v154, %v166
    %v181 = vmul.f32 %v153, %v170
    %v182 = vmul.f32 %v152, %v174
    %183 = vst [vmem:[#allocation2 + $0x40] sm:$0xff] %v179
    %184 = vst [vmem:[#allocation2 + $0x48] sm:$0xff] %v180
    %185 = vst [vmem:[#allocation2 + $0x50] sm:$0xff] %v181
    %186 = vst [vmem:[#allocation2 + $0x58] sm:$0xff] %v182
    %187 = vrot.lane.b32.xlu0 %v50, 1
    %v188 = vpop.permute.xlu0 %187
    %189 = vrot.lane.b32.xlu0 %v51, 1
    %v190 = vpop.permute.xlu0 %189
    %191 = vrot.lane.b32.xlu0 %v52, 1
    %v192 = vpop.permute.xlu0 %191
    %193 = vrot.lane.b32.xlu0 %v53, 1
    %v194 = vpop.permute.xlu0 %193
    %vm195 = vcmp.lt.s32.totalorder %v63, 1
    %v196 = vsel %vm195, %v192, %v194
    %v197 = vsel %vm195, %v190, %v192
    %v198 = vsel %vm195, %v188, %v190
    %v199 = vsel %vm195, %v194, %v188
    %s200 = scalar_lea.vmem [#allocation3], 12
    %v201 = vld [vmem:[%s200] sm:$0xf]
    %v203 = vlaneseq
    %v204 = vshrl.u32 %v203, 7
    %v205 = vsub.s32 0, %v204
    %v206 = vrot.slane %v201, %v205
    %v207 = vlaneseq
    %v208 = vshrl.u32 %v207, 7
    %v209 = vsub.s32 1, %v208
    %v210 = vrot.slane %v201, %v209
    %v211 = vlaneseq
    %v212 = vshrl.u32 %v211, 7
    %v213 = vsub.s32 2, %v212
    %v214 = vrot.slane %v201, %v213
    %v215 = vlaneseq
    %v216 = vshrl.u32 %v215, 7
    %v217 = vsub.s32 3, %v216
    %v218 = vrot.slane %v201, %v217
    %v223 = vmul.f32 %v199, %v206
    %v224 = vmul.f32 %v198, %v210
    %v225 = vmul.f32 %v197, %v214
    %v226 = vmul.f32 %v196, %v218
    %227 = vst [vmem:[#allocation2 + $0x60] sm:$0xff] %v223
    %228 = vst [vmem:[#allocation2 + $0x68] sm:$0xff] %v224
    %229 = vst [vmem:[#allocation2 + $0x70] sm:$0xff] %v225
    %230 = vst [vmem:[#allocation2 + $0x78] sm:$0xff] %v226
    %231 = vst [vmem:[#allocation2 + $0x80] sm:$0xff] %v50
    %232 = vst [vmem:[#allocation2 + $0x88] sm:$0xff] %v51
    %233 = vst [vmem:[#allocation2 + $0x90] sm:$0xff] %v52
    %234 = vst [vmem:[#allocation2 + $0x98] sm:$0xff] %v53
    %235 = vrot.lane.b32.xlu0 %v50, 127
    %v236 = vpop.permute.xlu0 %235
    %237 = vrot.lane.b32.xlu0 %v51, 127
    %v238 = vpop.permute.xlu0 %237
    %239 = vrot.lane.b32.xlu0 %v52, 127
    %v240 = vpop.permute.xlu0 %239
    %241 = vrot.lane.b32.xlu0 %v53, 127
    %v242 = vpop.permute.xlu0 %241
    %vm243 = vcmp.lt.s32.totalorder %v63, 127
    %v244 = vsel %vm243, %v240, %v242
    %v245 = vsel %vm243, %v238, %v240
    %v246 = vsel %vm243, %v236, %v238
    %v247 = vsel %vm243, %v242, %v236
    %s248 = scalar_lea.vmem [#allocation3], 20
    %v249 = vld [vmem:[%s248] sm:$0xf]
    %v251 = vlaneseq
    %v252 = vshrl.u32 %v251, 7
    %v253 = vsub.s32 0, %v252
    %v254 = vrot.slane %v249, %v253
    %v255 = vlaneseq
    %v256 = vshrl.u32 %v255, 7
    %v257 = vsub.s32 1, %v256
    %v258 = vrot.slane %v249, %v257
    %v259 = vlaneseq
    %v260 = vshrl.u32 %v259, 7
    %v261 = vsub.s32 2, %v260
    %v262 = vrot.slane %v249, %v261
    %v263 = vlaneseq
    %v264 = vshrl.u32 %v263, 7
    %v265 = vsub.s32 3, %v264
    %v266 = vrot.slane %v249, %v265
    %v271 = vmul.f32 %v246, %v254
    %v272 = vmul.f32 %v245, %v258
    %v273 = vmul.f32 %v244, %v262
    %v274 = vmul.f32 %v247, %v266
    %275 = vst [vmem:[#allocation2 + $0xa0] sm:$0xff] %v271
    %276 = vst [vmem:[#allocation2 + $0xa8] sm:$0xff] %v272
    %277 = vst [vmem:[#allocation2 + $0xb0] sm:$0xff] %v273
    %278 = vst [vmem:[#allocation2 + $0xb8] sm:$0xff] %v274
    %279 = vrot.lane.b32.xlu0 %v50, 113
    %v280 = vpop.permute.xlu0 %279
    %281 = vrot.lane.b32.xlu0 %v51, 113
    %v282 = vpop.permute.xlu0 %281
    %283 = vrot.lane.b32.xlu0 %v52, 113
    %v284 = vpop.permute.xlu0 %283
    %285 = vrot.lane.b32.xlu0 %v53, 113
    %v286 = vpop.permute.xlu0 %285
    %vm287 = vcmp.lt.s32.totalorder %v63, 113
    %v288 = vsel %vm287, %v284, %v286
    %v289 = vsel %vm287, %v282, %v284
    %v290 = vsel %vm287, %v280, %v282
    %v291 = vsel %vm287, %v286, %v280
    %s292 = scalar_lea.vmem [#allocation3], 24
    %v293 = vld [vmem:[%s292] sm:$0xf]
    %v295 = vlaneseq
    %v296 = vshrl.u32 %v295, 7
    %v297 = vsub.s32 0, %v296
    %v298 = vrot.slane %v293, %v297
    %v299 = vlaneseq
    %v300 = vshrl.u32 %v299, 7
    %v301 = vsub.s32 1, %v300
    %v302 = vrot.slane %v293, %v301
    %v303 = vlaneseq
    %v304 = vshrl.u32 %v303, 7
    %v305 = vsub.s32 2, %v304
    %v306 = vrot.slane %v293, %v305
    %v307 = vlaneseq
    %v308 = vshrl.u32 %v307, 7
    %v309 = vsub.s32 3, %v308
    %v310 = vrot.slane %v293, %v309
    %v315 = vmul.f32 %v290, %v298
    %v316 = vmul.f32 %v289, %v302
    %v317 = vmul.f32 %v288, %v306
    %v318 = vmul.f32 %v291, %v310
    %319 = vst [vmem:[#allocation2 + $0xc0] sm:$0xff] %v315
    %320 = vst [vmem:[#allocation2 + $0xc8] sm:$0xff] %v316
    %321 = vst [vmem:[#allocation2 + $0xd0] sm:$0xff] %v317
    %322 = vst [vmem:[#allocation2 + $0xd8] sm:$0xff] %v318
    %323 = vrot.lane.b32.xlu0 %v50, 112
    %v324 = vpop.permute.xlu0 %323
    %325 = vrot.lane.b32.xlu0 %v51, 112
    %v326 = vpop.permute.xlu0 %325
    %327 = vrot.lane.b32.xlu0 %v52, 112
    %v328 = vpop.permute.xlu0 %327
    %329 = vrot.lane.b32.xlu0 %v53, 112
    %v330 = vpop.permute.xlu0 %329
    %vm331 = vcmp.lt.s32.totalorder %v63, 112
    %v332 = vsel %vm331, %v328, %v330
    %v333 = vsel %vm331, %v326, %v328
    %v334 = vsel %vm331, %v324, %v326
    %v335 = vsel %vm331, %v330, %v324
    %s336 = scalar_lea.vmem [#allocation3], 28
    %v337 = vld [vmem:[%s336] sm:$0xf]
    %v339 = vlaneseq
    %v340 = vshrl.u32 %v339, 7
    %v341 = vsub.s32 0, %v340
    %v342 = vrot.slane %v337, %v341
    %v343 = vlaneseq
    %v344 = vshrl.u32 %v343, 7
    %v345 = vsub.s32 1, %v344
    %v346 = vrot.slane %v337, %v345
    %v347 = vlaneseq
    %v348 = vshrl.u32 %v347, 7
    %v349 = vsub.s32 2, %v348
    %v350 = vrot.slane %v337, %v349
    %v351 = vlaneseq
    %v352 = vshrl.u32 %v351, 7
    %v353 = vsub.s32 3, %v352
    %v354 = vrot.slane %v337, %v353
    %v359 = vmul.f32 %v334, %v342
    %v360 = vmul.f32 %v333, %v346
    %v361 = vmul.f32 %v332, %v350
    %v362 = vmul.f32 %v335, %v354
    %363 = vst [vmem:[#allocation2 + $0xe0] sm:$0xff] %v359
    %364 = vst [vmem:[#allocation2 + $0xe8] sm:$0xff] %v360
    %365 = vst [vmem:[#allocation2 + $0xf0] sm:$0xff] %v361
    %366 = vst [vmem:[#allocation2 + $0xf8] sm:$0xff] %v362
    %367 = vrot.lane.b32.xlu0 %v50, 111
    %v368 = vpop.permute.xlu0 %367
    %369 = vrot.lane.b32.xlu0 %v51, 111
    %v370 = vpop.permute.xlu0 %369
    %371 = vrot.lane.b32.xlu0 %v52, 111
    %v372 = vpop.permute.xlu0 %371
    %373 = vrot.lane.b32.xlu0 %v53, 111
    %v374 = vpop.permute.xlu0 %373
    %vm375 = vcmp.lt.s32.totalorder %v63, 111
    %v376 = vsel %vm375, %v372, %v374
    %v377 = vsel %vm375, %v370, %v372
    %v378 = vsel %vm375, %v368, %v370
    %v379 = vsel %vm375, %v374, %v368
    %s380 = scalar_lea.vmem [#allocation3], 32
    %v381 = vld [vmem:[%s380] sm:$0xf]
    %v383 = vlaneseq
    %v384 = vshrl.u32 %v383, 7
    %v385 = vsub.s32 0, %v384
    %v386 = vrot.slane %v381, %v385
    %v387 = vlaneseq
    %v388 = vshrl.u32 %v387, 7
    %v389 = vsub.s32 1, %v388
    %v390 = vrot.slane %v381, %v389
    %v391 = vlaneseq
    %v392 = vshrl.u32 %v391, 7
    %v393 = vsub.s32 2, %v392
    %v394 = vrot.slane %v381, %v393
    %v395 = vlaneseq
    %v396 = vshrl.u32 %v395, 7
    %v397 = vsub.s32 3, %v396
    %v398 = vrot.slane %v381, %v397
    %v403 = vmul.f32 %v378, %v386
    %v404 = vmul.f32 %v377, %v390
    %v405 = vmul.f32 %v376, %v394
    %v406 = vmul.f32 %v379, %v398
    %407 = vst [vmem:[#allocation2 + $0x100] sm:$0xff] %v403
    %408 = vst [vmem:[#allocation2 + $0x108] sm:$0xff] %v404
    %409 = vst [vmem:[#allocation2 + $0x110] sm:$0xff] %v405
    %410 = vst [vmem:[#allocation2 + $0x118] sm:$0xff] %v406
    %v411 = vld [vmem:[#allocation2] sm:$0xff]
    %v412 = vld [vmem:[#allocation2 + $0x8] sm:$0xff]
    %v413 = vld [vmem:[#allocation2 + $0x10] sm:$0xff]
    %v414 = vld [vmem:[#allocation2 + $0x18] sm:$0xff]
    %v415 = vld [vmem:[#allocation2 + $0x20] sm:$0xff]
    %v416 = vld [vmem:[#allocation2 + $0x28] sm:$0xff]
    %v417 = vld [vmem:[#allocation2 + $0x30] sm:$0xff]
    %v418 = vld [vmem:[#allocation2 + $0x38] sm:$0xff]
    %v419 = vld [vmem:[#allocation2 + $0x40] sm:$0xff]
    %v420 = vld [vmem:[#allocation2 + $0x48] sm:$0xff]
    %v421 = vld [vmem:[#allocation2 + $0x50] sm:$0xff]
    %v422 = vld [vmem:[#allocation2 + $0x58] sm:$0xff]
    %v423 = vld [vmem:[#allocation2 + $0x60] sm:$0xff]
    %v424 = vld [vmem:[#allocation2 + $0x68] sm:$0xff]
    %v425 = vld [vmem:[#allocation2 + $0x70] sm:$0xff]
    %v426 = vld [vmem:[#allocation2 + $0x78] sm:$0xff]
    %v427 = vld [vmem:[#allocation2 + $0x80] sm:$0xff]
    %v428 = vld [vmem:[#allocation2 + $0x88] sm:$0xff]
    %v429 = vld [vmem:[#allocation2 + $0x90] sm:$0xff]
    %v430 = vld [vmem:[#allocation2 + $0x98] sm:$0xff]
    %v431 = vld [vmem:[#allocation2 + $0xa0] sm:$0xff]
    %v432 = vld [vmem:[#allocation2 + $0xa8] sm:$0xff]
    %v433 = vld [vmem:[#allocation2 + $0xb0] sm:$0xff]
    %v434 = vld [vmem:[#allocation2 + $0xb8] sm:$0xff]
    %v435 = vld [vmem:[#allocation2 + $0xc0] sm:$0xff]
    %v436 = vld [vmem:[#allocation2 + $0xc8] sm:$0xff]
    %v437 = vld [vmem:[#allocation2 + $0xd0] sm:$0xff]
    %v438 = vld [vmem:[#allocation2 + $0xd8] sm:$0xff]
    %v439 = vld [vmem:[#allocation2 + $0xe0] sm:$0xff]
    %v440 = vld [vmem:[#allocation2 + $0xe8] sm:$0xff]
    %v441 = vld [vmem:[#allocation2 + $0xf0] sm:$0xff]
    %v442 = vld [vmem:[#allocation2 + $0xf8] sm:$0xff]
    %v443 = vld [vmem:[#allocation2 + $0x100] sm:$0xff]
    %v444 = vld [vmem:[#allocation2 + $0x108] sm:$0xff]
    %v445 = vld [vmem:[#allocation2 + $0x110] sm:$0xff]
    %v446 = vld [vmem:[#allocation2 + $0x118] sm:$0xff]
    %v447 = vld [vmem:[%s2] sm:$0xff]
    %v448 = vld [vmem:[%s3] sm:$0xff]
    %450 = vset.pattern.permute.xlu0 0
    %451 = vperm.xlu0 %450, %v448
    %v452 = vpop.permute.xlu0 %451
    %vm454 = vcmask 588800
    %v456 = vsel %vm454, %v447, 0
    %458 = vmatprep.subr.mxu0 0.0
    %459 = vmatpush1.msra.mxu0 0.0
    %460 = vmatprep.subr.mxu0 0.0
    %461 = vmatpush1.msra.mxu0 0.0
    %462 = vmatprep.subr.mxu0 0.0
    %463 = vmatpush1.msra.mxu0 0.0
    %464 = vmatprep.subr.mxu0 0.0
    %465 = vmatpush1.msra.mxu0 0.0
    %466 = vmatprep.subr.mxu0 0.0
    %467 = vmatpush1.msra.mxu0 0.0
    %468 = vmatprep.subr.mxu0 0.0
    %469 = vmatpush1.msra.mxu0 0.0
    %470 = vmatprep.subr.mxu0 0.0
    %471 = vmatpush1.msra.mxu0 0.0
    %472 = vmatprep.subr.mxu0 %v444
    %473 = vmatpush1.msra.mxu0 %v443
    %474 = vmatprep.subr.mxu0 %v440
    %475 = vmatpush1.msra.mxu0 %v439
    %476 = vmatprep.subr.mxu0 %v436
    %477 = vmatpush1.msra.mxu0 %v435
    %478 = vmatprep.subr.mxu0 %v432
    %479 = vmatpush1.msra.mxu0 %v431
    %480 = vmatprep.subr.mxu0 %v428
    %481 = vmatpush1.msra.mxu0 %v427
    %482 = vmatprep.subr.mxu0 %v424
    %483 = vmatpush1.msra.mxu0 %v423
    %484 = vmatprep.subr.mxu0 %v420
    %485 = vmatpush1.msra.mxu0 %v419
    %486 = vmatprep.subr.mxu0 %v416
    %487 = vmatpush1.msra.mxu0 %v415
    %488 = vmatprep.subr.mxu0 %v412
    %489 = vmatpush1.msra.mxu0 %v411
    %490 = vmatprep.subr.mxu0 0.0
    %491 = vmatpush2.msra.mxu0 0.0
    %492 = vmatprep.subr.mxu0 0.0
    %493 = vmatpush2.msra.mxu0 0.0
    %494 = vmatprep.subr.mxu0 0.0
    %495 = vmatpush2.msra.mxu0 0.0
    %496 = vmatprep.subr.mxu0 0.0
    %497 = vmatpush2.msra.mxu0 0.0
    %498 = vmatprep.subr.mxu0 0.0
    %499 = vmatpush2.msra.mxu0 0.0
    %500 = vmatprep.subr.mxu0 0.0
    %501 = vmatpush2.msra.mxu0 0.0
    %502 = vmatprep.subr.mxu0 0.0
    %503 = vmatpush2.msra.mxu0 0.0
    %504 = vmatprep.subr.mxu0 0.0
    %505 = vmatpush2.msra.mxu0 0.0
    %506 = vmatprep.subr.mxu0 0.0
    %507 = vmatpush2.msra.mxu0 0.0
    %508 = vmatprep.subr.mxu0 0.0
    %509 = vmatpush2.msra.mxu0 0.0
    %510 = vmatprep.subr.mxu0 0.0
    %511 = vmatpush2.msra.mxu0 0.0
    %512 = vmatprep.subr.mxu0 0.0
    %513 = vmatpush2.msra.mxu0 0.0
    %514 = vmatprep.subr.mxu0 0.0
    %515 = vmatpush2.msra.mxu0 0.0
    %516 = vmatprep.subr.mxu0 0.0
    %517 = vmatpush2.msra.mxu0 0.0
    %518 = vmatprep.subr.mxu0 0.0
    %519 = vmatpush2.msra.mxu0 0.0
    %520 = vmatprep.subr.mxu0 0.0
    %521 = vmatpush2.msra.mxu0 0.0
    %522 = vmatprep.mubr.f32.mxu0 0.0
    %523 = vmatmul.mubr.f32.gmra.mxu0 %v456
    %v524 = vpop.f32.mrf.mxu0
    %v525 = vadd.f32 %v452, %v524
    %v526 = vpop.f32.mrf.mxu0
    %v527 = vadd.f32 %v452, %v526
    %528 = vdwg.mxu0
    %529 = vmatprep.subr.mxu0 0.0
    %530 = vmatpush1.msra.mxu0 0.0
    %531 = vmatprep.subr.mxu0 0.0
    %532 = vmatpush1.msra.mxu0 0.0
    %533 = vmatprep.subr.mxu0 0.0
    %534 = vmatpush1.msra.mxu0 0.0
    %535 = vmatprep.subr.mxu0 0.0
    %536 = vmatpush1.msra.mxu0 0.0
    %537 = vmatprep.subr.mxu0 0.0
    %538 = vmatpush1.msra.mxu0 0.0
    %539 = vmatprep.subr.mxu0 0.0
    %540 = vmatpush1.msra.mxu0 0.0
    %541 = vmatprep.subr.mxu0 0.0
    %542 = vmatpush1.msra.mxu0 0.0
    %543 = vmatprep.subr.mxu0 %v446
    %544 = vmatpush1.msra.mxu0 %v445
    %545 = vmatprep.subr.mxu0 %v442
    %546 = vmatpush1.msra.mxu0 %v441
    %547 = vmatprep.subr.mxu0 %v438
    %548 = vmatpush1.msra.mxu0 %v437
    %549 = vmatprep.subr.mxu0 %v434
    %550 = vmatpush1.msra.mxu0 %v433
    %551 = vmatprep.subr.mxu0 %v430
    %552 = vmatpush1.msra.mxu0 %v429
    %553 = vmatprep.subr.mxu0 %v426
    %554 = vmatpush1.msra.mxu0 %v425
    %555 = vmatprep.subr.mxu0 %v422
    %556 = vmatpush1.msra.mxu0 %v421
    %557 = vmatprep.subr.mxu0 %v418
    %558 = vmatpush1.msra.mxu0 %v417
    %559 = vmatprep.subr.mxu0 %v414
    %560 = vmatpush1.msra.mxu0 %v413
    %561 = vmatprep.subr.mxu0 0.0
    %562 = vmatpush2.msra.mxu0 0.0
    %563 = vmatprep.subr.mxu0 0.0
    %564 = vmatpush2.msra.mxu0 0.0
    %565 = vmatprep.subr.mxu0 0.0
    %566 = vmatpush2.msra.mxu0 0.0
    %567 = vmatprep.subr.mxu0 0.0
    %568 = vmatpush2.msra.mxu0 0.0
    %569 = vmatprep.subr.mxu0 0.0
    %570 = vmatpush2.msra.mxu0 0.0
    %571 = vmatprep.subr.mxu0 0.0
    %572 = vmatpush2.msra.mxu0 0.0
    %573 = vmatprep.subr.mxu0 0.0
    %574 = vmatpush2.msra.mxu0 0.0
    %575 = vmatprep.subr.mxu0 0.0
    %576 = vmatpush2.msra.mxu0 0.0
    %577 = vmatprep.subr.mxu0 0.0
    %578 = vmatpush2.msra.mxu0 0.0
    %579 = vmatprep.subr.mxu0 0.0
    %580 = vmatpush2.msra.mxu0 0.0
    %581 = vmatprep.subr.mxu0 0.0
    %582 = vmatpush2.msra.mxu0 0.0
    %583 = vmatprep.subr.mxu0 0.0
    %584 = vmatpush2.msra.mxu0 0.0
    %585 = vmatprep.subr.mxu0 0.0
    %586 = vmatpush2.msra.mxu0 0.0
    %587 = vmatprep.subr.mxu0 0.0
    %588 = vmatpush2.msra.mxu0 0.0
    %589 = vmatprep.subr.mxu0 0.0
    %590 = vmatpush2.msra.mxu0 0.0
    %591 = vmatprep.subr.mxu0 0.0
    %592 = vmatpush2.msra.mxu0 0.0
    %593 = vmatprep.mubr.f32.mxu0 0.0
    %594 = vmatmul.mubr.f32.gmra.mxu0 %v456
    %v595 = vpop.f32.mrf.mxu0
    %v596 = vadd.f32 %v452, %v595
    %v597 = vpop.f32.mrf.mxu0
    %v598 = vadd.f32 %v452, %v597
    %599 = vdwg.mxu0
    %v600 = vmax.f32 %v525, 0.0
    %v601 = vmax.f32 %v527, 0.0
    %v602 = vmax.f32 %v596, 0.0
    %v603 = vmax.f32 %v598, 0.0
    %604 = vrot.lane.b32.xlu0 %v600, 17
    %v605 = vpop.permute.xlu0 %604
    %606 = vrot.lane.b32.xlu0 %v601, 17
    %v607 = vpop.permute.xlu0 %606
    %608 = vrot.lane.b32.xlu0 %v602, 17
    %v609 = vpop.permute.xlu0 %608
    %610 = vrot.lane.b32.xlu0 %v603, 17
    %v611 = vpop.permute.xlu0 %610
    %v612 = vsel %vm64, %v609, %v611
    %v613 = vsel %vm64, %v607, %v609
    %v614 = vsel %vm64, %v605, %v607
    %v615 = vsel %vm64, %v611, %v605
    %v616 = vld [vmem:[#allocation3] sm:$0xf]
    %v618 = vlaneseq
    %v619 = vshrl.u32 %v618, 7
    %v620 = vsub.s32 0, %v619
    %v621 = vrot.slane %v616, %v620
    %v622 = vlaneseq
    %v623 = vshrl.u32 %v622, 7
    %v624 = vsub.s32 1, %v623
    %v625 = vrot.slane %v616, %v624
    %v626 = vlaneseq
    %v627 = vshrl.u32 %v626, 7
    %v628 = vsub.s32 2, %v627
    %v629 = vrot.slane %v616, %v628
    %v630 = vlaneseq
    %v631 = vshrl.u32 %v630, 7
    %v632 = vsub.s32 3, %v631
    %v633 = vrot.slane %v616, %v632
    %v638 = vmul.f32 %v615, %v621
    %v639 = vmul.f32 %v614, %v625
    %v640 = vmul.f32 %v613, %v629
    %v641 = vmul.f32 %v612, %v633
    %642 = vst [vmem:[#allocation2] sm:$0xff] %v638
    %643 = vst [vmem:[#allocation2 + $0x8] sm:$0xff] %v639
    %644 = vst [vmem:[#allocation2 + $0x10] sm:$0xff] %v640
    %645 = vst [vmem:[#allocation2 + $0x18] sm:$0xff] %v641
    %646 = vrot.lane.b32.xlu0 %v600, 16
    %v647 = vpop.permute.xlu0 %646
    %648 = vrot.lane.b32.xlu0 %v601, 16
    %v649 = vpop.permute.xlu0 %648
    %650 = vrot.lane.b32.xlu0 %v602, 16
    %v651 = vpop.permute.xlu0 %650
    %652 = vrot.lane.b32.xlu0 %v603, 16
    %v653 = vpop.permute.xlu0 %652
    %v654 = vsel %vm107, %v651, %v653
    %v655 = vsel %vm107, %v649, %v651
    %v656 = vsel %vm107, %v647, %v649
    %v657 = vsel %vm107, %v653, %v647
    %v658 = vld [vmem:[%s112] sm:$0xf]
    %v660 = vlaneseq
    %v661 = vshrl.u32 %v660, 7
    %v662 = vsub.s32 0, %v661
    %v663 = vrot.slane %v658, %v662
    %v664 = vlaneseq
    %v665 = vshrl.u32 %v664, 7
    %v666 = vsub.s32 1, %v665
    %v667 = vrot.slane %v658, %v666
    %v668 = vlaneseq
    %v669 = vshrl.u32 %v668, 7
    %v670 = vsub.s32 2, %v669
    %v671 = vrot.slane %v658, %v670
    %v672 = vlaneseq
    %v673 = vshrl.u32 %v672, 7
    %v674 = vsub.s32 3, %v673
    %v675 = vrot.slane %v658, %v674
    %v680 = vmul.f32 %v657, %v663
    %v681 = vmul.f32 %v656, %v667
    %v682 = vmul.f32 %v655, %v671
    %v683 = vmul.f32 %v654, %v675
    %684 = vst [vmem:[#allocation2 + $0x20] sm:$0xff] %v680
    %685 = vst [vmem:[#allocation2 + $0x28] sm:$0xff] %v681
    %686 = vst [vmem:[#allocation2 + $0x30] sm:$0xff] %v682
    %687 = vst [vmem:[#allocation2 + $0x38] sm:$0xff] %v683
    %688 = vrot.lane.b32.xlu0 %v600, 15
    %v689 = vpop.permute.xlu0 %688
    %690 = vrot.lane.b32.xlu0 %v601, 15
    %v691 = vpop.permute.xlu0 %690
    %692 = vrot.lane.b32.xlu0 %v602, 15
    %v693 = vpop.permute.xlu0 %692
    %694 = vrot.lane.b32.xlu0 %v603, 15
    %v695 = vpop.permute.xlu0 %694
    %v696 = vsel %vm151, %v693, %v695
    %v697 = vsel %vm151, %v691, %v693
    %v698 = vsel %vm151, %v689, %v691
    %v699 = vsel %vm151, %v695, %v689
    %v700 = vld [vmem:[%s156] sm:$0xf]
    %v702 = vlaneseq
    %v703 = vshrl.u32 %v702, 7
    %v704 = vsub.s32 0, %v703
    %v705 = vrot.slane %v700, %v704
    %v706 = vlaneseq
    %v707 = vshrl.u32 %v706, 7
    %v708 = vsub.s32 1, %v707
    %v709 = vrot.slane %v700, %v708
    %v710 = vlaneseq
    %v711 = vshrl.u32 %v710, 7
    %v712 = vsub.s32 2, %v711
    %v713 = vrot.slane %v700, %v712
    %v714 = vlaneseq
    %v715 = vshrl.u32 %v714, 7
    %v716 = vsub.s32 3, %v715
    %v717 = vrot.slane %v700, %v716
    %v722 = vmul.f32 %v699, %v705
    %v723 = vmul.f32 %v698, %v709
    %v724 = vmul.f32 %v697, %v713
    %v725 = vmul.f32 %v696, %v717
    %726 = vst [vmem:[#allocation2 + $0x40] sm:$0xff] %v722
    %727 = vst [vmem:[#allocation2 + $0x48] sm:$0xff] %v723
    %728 = vst [vmem:[#allocation2 + $0x50] sm:$0xff] %v724
    %729 = vst [vmem:[#allocation2 + $0x58] sm:$0xff] %v725
    %730 = vrot.lane.b32.xlu0 %v600, 1
    %v731 = vpop.permute.xlu0 %730
    %732 = vrot.lane.b32.xlu0 %v601, 1
    %v733 = vpop.permute.xlu0 %732
    %734 = vrot.lane.b32.xlu0 %v602, 1
    %v735 = vpop.permute.xlu0 %734
    %736 = vrot.lane.b32.xlu0 %v603, 1
    %v737 = vpop.permute.xlu0 %736
    %v738 = vsel %vm195, %v735, %v737
    %v739 = vsel %vm195, %v733, %v735
    %v740 = vsel %vm195, %v731, %v733
    %v741 = vsel %vm195, %v737, %v731
    %v742 = vld [vmem:[%s200] sm:$0xf]
    %v744 = vlaneseq
    %v745 = vshrl.u32 %v744, 7
    %v746 = vsub.s32 0, %v745
    %v747 = vrot.slane %v742, %v746
    %v748 = vlaneseq
    %v749 = vshrl.u32 %v748, 7
    %v750 = vsub.s32 1, %v749
    %v751 = vrot.slane %v742, %v750
    %v752 = vlaneseq
    %v753 = vshrl.u32 %v752, 7
    %v754 = vsub.s32 2, %v753
    %v755 = vrot.slane %v742, %v754
    %v756 = vlaneseq
    %v757 = vshrl.u32 %v756, 7
    %v758 = vsub.s32 3, %v757
    %v759 = vrot.slane %v742, %v758
    %v764 = vmul.f32 %v741, %v747
    %v765 = vmul.f32 %v740, %v751
    %v766 = vmul.f32 %v739, %v755
    %v767 = vmul.f32 %v738, %v759
    %768 = vst [vmem:[#allocation2 + $0x60] sm:$0xff] %v764
    %769 = vst [vmem:[#allocation2 + $0x68] sm:$0xff] %v765
    %770 = vst [vmem:[#allocation2 + $0x70] sm:$0xff] %v766
    %771 = vst [vmem:[#allocation2 + $0x78] sm:$0xff] %v767
    %772 = vst [vmem:[#allocation2 + $0x80] sm:$0xff] %v600
    %773 = vst [vmem:[#allocation2 + $0x88] sm:$0xff] %v601
    %774 = vst [vmem:[#allocation2 + $0x90] sm:$0xff] %v602
    %775 = vst [vmem:[#allocation2 + $0x98] sm:$0xff] %v603
    %776 = vrot.lane.b32.xlu0 %v600, 127
    %v777 = vpop.permute.xlu0 %776
    %778 = vrot.lane.b32.xlu0 %v601, 127
    %v779 = vpop.permute.xlu0 %778
    %780 = vrot.lane.b32.xlu0 %v602, 127
    %v781 = vpop.permute.xlu0 %780
    %782 = vrot.lane.b32.xlu0 %v603, 127
    %v783 = vpop.permute.xlu0 %782
    %v784 = vsel %vm243, %v781, %v783
    %v785 = vsel %vm243, %v779, %v781
    %v786 = vsel %vm243, %v777, %v779
    %v787 = vsel %vm243, %v783, %v777
    %v788 = vld [vmem:[%s248] sm:$0xf]
    %v790 = vlaneseq
    %v791 = vshrl.u32 %v790, 7
    %v792 = vsub.s32 0, %v791
    %v793 = vrot.slane %v788, %v792
    %v794 = vlaneseq
    %v795 = vshrl.u32 %v794, 7
    %v796 = vsub.s32 1, %v795
    %v797 = vrot.slane %v788, %v796
    %v798 = vlaneseq
    %v799 = vshrl.u32 %v798, 7
    %v800 = vsub.s32 2, %v799
    %v801 = vrot.slane %v788, %v800
    %v802 = vlaneseq
    %v803 = vshrl.u32 %v802, 7
    %v804 = vsub.s32 3, %v803
    %v805 = vrot.slane %v788, %v804
    %v810 = vmul.f32 %v786, %v793
    %v811 = vmul.f32 %v785, %v797
    %v812 = vmul.f32 %v784, %v801
    %v813 = vmul.f32 %v787, %v805
    %814 = vst [vmem:[#allocation2 + $0xa0] sm:$0xff] %v810
    %815 = vst [vmem:[#allocation2 + $0xa8] sm:$0xff] %v811
    %816 = vst [vmem:[#allocation2 + $0xb0] sm:$0xff] %v812
    %817 = vst [vmem:[#allocation2 + $0xb8] sm:$0xff] %v813
    %818 = vrot.lane.b32.xlu0 %v600, 113
    %v819 = vpop.permute.xlu0 %818
    %820 = vrot.lane.b32.xlu0 %v601, 113
    %v821 = vpop.permute.xlu0 %820
    %822 = vrot.lane.b32.xlu0 %v602, 113
    %v823 = vpop.permute.xlu0 %822
    %824 = vrot.lane.b32.xlu0 %v603, 113
    %v825 = vpop.permute.xlu0 %824
    %v826 = vsel %vm287, %v823, %v825
    %v827 = vsel %vm287, %v821, %v823
    %v828 = vsel %vm287, %v819, %v821
    %v829 = vsel %vm287, %v825, %v819
    %v830 = vld [vmem:[%s292] sm:$0xf]
    %v832 = vlaneseq
    %v833 = vshrl.u32 %v832, 7
    %v834 = vsub.s32 0, %v833
    %v835 = vrot.slane %v830, %v834
    %v836 = vlaneseq
    %v837 = vshrl.u32 %v836, 7
    %v838 = vsub.s32 1, %v837
    %v839 = vrot.slane %v830, %v838
    %v840 = vlaneseq
    %v841 = vshrl.u32 %v840, 7
    %v842 = vsub.s32 2, %v841
    %v843 = vrot.slane %v830, %v842
    %v844 = vlaneseq
    %v845 = vshrl.u32 %v844, 7
    %v846 = vsub.s32 3, %v845
    %v847 = vrot.slane %v830, %v846
    %v852 = vmul.f32 %v828, %v835
    %v853 = vmul.f32 %v827, %v839
    %v854 = vmul.f32 %v826, %v843
    %v855 = vmul.f32 %v829, %v847
    %856 = vst [vmem:[#allocation2 + $0xc0] sm:$0xff] %v852
    %857 = vst [vmem:[#allocation2 + $0xc8] sm:$0xff] %v853
    %858 = vst [vmem:[#allocation2 + $0xd0] sm:$0xff] %v854
    %859 = vst [vmem:[#allocation2 + $0xd8] sm:$0xff] %v855
    %860 = vrot.lane.b32.xlu0 %v600, 112
    %v861 = vpop.permute.xlu0 %860
    %862 = vrot.lane.b32.xlu0 %v601, 112
    %v863 = vpop.permute.xlu0 %862
    %864 = vrot.lane.b32.xlu0 %v602, 112
    %v865 = vpop.permute.xlu0 %864
    %866 = vrot.lane.b32.xlu0 %v603, 112
    %v867 = vpop.permute.xlu0 %866
    %v868 = vsel %vm331, %v865, %v867
    %v869 = vsel %vm331, %v863, %v865
    %v870 = vsel %vm331, %v861, %v863
    %v871 = vsel %vm331, %v867, %v861
    %v872 = vld [vmem:[%s336] sm:$0xf]
    %v874 = vlaneseq
    %v875 = vshrl.u32 %v874, 7
    %v876 = vsub.s32 0, %v875
    %v877 = vrot.slane %v872, %v876
    %v878 = vlaneseq
    %v879 = vshrl.u32 %v878, 7
    %v880 = vsub.s32 1, %v879
    %v881 = vrot.slane %v872, %v880
    %v882 = vlaneseq
    %v883 = vshrl.u32 %v882, 7
    %v884 = vsub.s32 2, %v883
    %v885 = vrot.slane %v872, %v884
    %v886 = vlaneseq
    %v887 = vshrl.u32 %v886, 7
    %v888 = vsub.s32 3, %v887
    %v889 = vrot.slane %v872, %v888
    %v894 = vmul.f32 %v870, %v877
    %v895 = vmul.f32 %v869, %v881
    %v896 = vmul.f32 %v868, %v885
    %v897 = vmul.f32 %v871, %v889
    %898 = vst [vmem:[#allocation2 + $0xe0] sm:$0xff] %v894
    %899 = vst [vmem:[#allocation2 + $0xe8] sm:$0xff] %v895
    %900 = vst [vmem:[#allocation2 + $0xf0] sm:$0xff] %v896
    %901 = vst [vmem:[#allocation2 + $0xf8] sm:$0xff] %v897
    %902 = vrot.lane.b32.xlu0 %v600, 111
    %v903 = vpop.permute.xlu0 %902
    %904 = vrot.lane.b32.xlu0 %v601, 111
    %v905 = vpop.permute.xlu0 %904
    %906 = vrot.lane.b32.xlu0 %v602, 111
    %v907 = vpop.permute.xlu0 %906
    %908 = vrot.lane.b32.xlu0 %v603, 111
    %v909 = vpop.permute.xlu0 %908
    %v910 = vsel %vm375, %v907, %v909
    %v911 = vsel %vm375, %v905, %v907
    %v912 = vsel %vm375, %v903, %v905
    %v913 = vsel %vm375, %v909, %v903
    %v914 = vld [vmem:[%s380] sm:$0xf]
    %v916 = vlaneseq
    %v917 = vshrl.u32 %v916, 7
    %v918 = vsub.s32 0, %v917
    %v919 = vrot.slane %v914, %v918
    %v920 = vlaneseq
    %v921 = vshrl.u32 %v920, 7
    %v922 = vsub.s32 1, %v921
    %v923 = vrot.slane %v914, %v922
    %v924 = vlaneseq
    %v925 = vshrl.u32 %v924, 7
    %v926 = vsub.s32 2, %v925
    %v927 = vrot.slane %v914, %v926
    %v928 = vlaneseq
    %v929 = vshrl.u32 %v928, 7
    %v930 = vsub.s32 3, %v929
    %v931 = vrot.slane %v914, %v930
    %v936 = vmul.f32 %v912, %v919
    %v937 = vmul.f32 %v911, %v923
    %v938 = vmul.f32 %v910, %v927
    %v939 = vmul.f32 %v913, %v931
    %940 = vst [vmem:[#allocation2 + $0x100] sm:$0xff] %v936
    %941 = vst [vmem:[#allocation2 + $0x108] sm:$0xff] %v937
    %942 = vst [vmem:[#allocation2 + $0x110] sm:$0xff] %v938
    %943 = vst [vmem:[#allocation2 + $0x118] sm:$0xff] %v939
    %v944 = vld [vmem:[#allocation2] sm:$0xff]
    %v945 = vld [vmem:[#allocation2 + $0x8] sm:$0xff]
    %v946 = vld [vmem:[#allocation2 + $0x10] sm:$0xff]
    %v947 = vld [vmem:[#allocation2 + $0x18] sm:$0xff]
    %v948 = vld [vmem:[#allocation2 + $0x20] sm:$0xff]
    %v949 = vld [vmem:[#allocation2 + $0x28] sm:$0xff]
    %v950 = vld [vmem:[#allocation2 + $0x30] sm:$0xff]
    %v951 = vld [vmem:[#allocation2 + $0x38] sm:$0xff]
    %v952 = vld [vmem:[#allocation2 + $0x40] sm:$0xff]
    %v953 = vld [vmem:[#allocation2 + $0x48] sm:$0xff]
    %v954 = vld [vmem:[#allocation2 + $0x50] sm:$0xff]
    %v955 = vld [vmem:[#allocation2 + $0x58] sm:$0xff]
    %v956 = vld [vmem:[#allocation2 + $0x60] sm:$0xff]
    %v957 = vld [vmem:[#allocation2 + $0x68] sm:$0xff]
    %v958 = vld [vmem:[#allocation2 + $0x70] sm:$0xff]
    %v959 = vld [vmem:[#allocation2 + $0x78] sm:$0xff]
    %v960 = vld [vmem:[#allocation2 + $0x80] sm:$0xff]
    %v961 = vld [vmem:[#allocation2 + $0x88] sm:$0xff]
    %v962 = vld [vmem:[#allocation2 + $0x90] sm:$0xff]
    %v963 = vld [vmem:[#allocation2 + $0x98] sm:$0xff]
    %v964 = vld [vmem:[#allocation2 + $0xa0] sm:$0xff]
    %v965 = vld [vmem:[#allocation2 + $0xa8] sm:$0xff]
    %v966 = vld [vmem:[#allocation2 + $0xb0] sm:$0xff]
    %v967 = vld [vmem:[#allocation2 + $0xb8] sm:$0xff]
    %v968 = vld [vmem:[#allocation2 + $0xc0] sm:$0xff]
    %v969 = vld [vmem:[#allocation2 + $0xc8] sm:$0xff]
    %v970 = vld [vmem:[#allocation2 + $0xd0] sm:$0xff]
    %v971 = vld [vmem:[#allocation2 + $0xd8] sm:$0xff]
    %v972 = vld [vmem:[#allocation2 + $0xe0] sm:$0xff]
    %v973 = vld [vmem:[#allocation2 + $0xe8] sm:$0xff]
    %v974 = vld [vmem:[#allocation2 + $0xf0] sm:$0xff]
    %v975 = vld [vmem:[#allocation2 + $0xf8] sm:$0xff]
    %v976 = vld [vmem:[#allocation2 + $0x100] sm:$0xff]
    %v977 = vld [vmem:[#allocation2 + $0x108] sm:$0xff]
    %v978 = vld [vmem:[#allocation2 + $0x110] sm:$0xff]
    %v979 = vld [vmem:[#allocation2 + $0x118] sm:$0xff]
    %v980 = vld [vmem:[%s4] sm:$0xff]
    %v981 = vld [vmem:[%s5] sm:$0xff]
    %983 = vset.pattern.permute.xlu0 0
    %984 = vperm.xlu0 %983, %v981
    %v985 = vpop.permute.xlu0 %984
    %v988 = vsel %vm454, %v980, 0
    %990 = vmatprep.subr.mxu0 0.0
    %991 = vmatpush1.msra.mxu0 0.0
    %992 = vmatprep.subr.mxu0 0.0
    %993 = vmatpush1.msra.mxu0 0.0
    %994 = vmatprep.subr.mxu0 0.0
    %995 = vmatpush1.msra.mxu0 0.0
    %996 = vmatprep.subr.mxu0 0.0
    %997 = vmatpush1.msra.mxu0 0.0
    %998 = vmatprep.subr.mxu0 0.0
    %999 = vmatpush1.msra.mxu0 0.0
    %1000 = vmatprep.subr.mxu0 0.0
    %1001 = vmatpush1.msra.mxu0 0.0
    %1002 = vmatprep.subr.mxu0 0.0
    %1003 = vmatpush1.msra.mxu0 0.0
    %1004 = vmatprep.subr.mxu0 %v977
    %1005 = vmatpush1.msra.mxu0 %v976
    %1006 = vmatprep.subr.mxu0 %v973
    %1007 = vmatpush1.msra.mxu0 %v972
    %1008 = vmatprep.subr.mxu0 %v969
    %1009 = vmatpush1.msra.mxu0 %v968
    %1010 = vmatprep.subr.mxu0 %v965
    %1011 = vmatpush1.msra.mxu0 %v964
    %1012 = vmatprep.subr.mxu0 %v961
    %1013 = vmatpush1.msra.mxu0 %v960
    %1014 = vmatprep.subr.mxu0 %v957
    %1015 = vmatpush1.msra.mxu0 %v956
    %1016 = vmatprep.subr.mxu0 %v953
    %1017 = vmatpush1.msra.mxu0 %v952
    %1018 = vmatprep.subr.mxu0 %v949
    %1019 = vmatpush1.msra.mxu0 %v948
    %1020 = vmatprep.subr.mxu0 %v945
    %1021 = vmatpush1.msra.mxu0 %v944
    %1022 = vmatprep.subr.mxu0 0.0
    %1023 = vmatpush2.msra.mxu0 0.0
    %1024 = vmatprep.subr.mxu0 0.0
    %1025 = vmatpush2.msra.mxu0 0.0
    %1026 = vmatprep.subr.mxu0 0.0
    %1027 = vmatpush2.msra.mxu0 0.0
    %1028 = vmatprep.subr.mxu0 0.0
    %1029 = vmatpush2.msra.mxu0 0.0
    %1030 = vmatprep.subr.mxu0 0.0
    %1031 = vmatpush2.msra.mxu0 0.0
    %1032 = vmatprep.subr.mxu0 0.0
    %1033 = vmatpush2.msra.mxu0 0.0
    %1034 = vmatprep.subr.mxu0 0.0
    %1035 = vmatpush2.msra.mxu0 0.0
    %1036 = vmatprep.subr.mxu0 0.0
    %1037 = vmatpush2.msra.mxu0 0.0
    %1038 = vmatprep.subr.mxu0 0.0
    %1039 = vmatpush2.msra.mxu0 0.0
    %1040 = vmatprep.subr.mxu0 0.0
    %1041 = vmatpush2.msra.mxu0 0.0
    %1042 = vmatprep.subr.mxu0 0.0
    %1043 = vmatpush2.msra.mxu0 0.0
    %1044 = vmatprep.subr.mxu0 0.0
    %1045 = vmatpush2.msra.mxu0 0.0
    %1046 = vmatprep.subr.mxu0 0.0
    %1047 = vmatpush2.msra.mxu0 0.0
    %1048 = vmatprep.subr.mxu0 0.0
    %1049 = vmatpush2.msra.mxu0 0.0
    %1050 = vmatprep.subr.mxu0 0.0
    %1051 = vmatpush2.msra.mxu0 0.0
    %1052 = vmatprep.subr.mxu0 0.0
    %1053 = vmatpush2.msra.mxu0 0.0
    %1054 = vmatprep.mubr.f32.mxu0 0.0
    %1055 = vmatmul.mubr.f32.gmra.mxu0 %v988
    %v1056 = vpop.f32.mrf.mxu0
    %v1057 = vadd.f32 %v985, %v1056
    %v1058 = vpop.f32.mrf.mxu0
    %v1059 = vadd.f32 %v985, %v1058
    %1060 = vdwg.mxu0
    %1061 = vmatprep.subr.mxu0 0.0
    %1062 = vmatpush1.msra.mxu0 0.0
    %1063 = vmatprep.subr.mxu0 0.0
    %1064 = vmatpush1.msra.mxu0 0.0
    %1065 = vmatprep.subr.mxu0 0.0
    %1066 = vmatpush1.msra.mxu0 0.0
    %1067 = vmatprep.subr.mxu0 0.0
    %1068 = vmatpush1.msra.mxu0 0.0
    %1069 = vmatprep.subr.mxu0 0.0
    %1070 = vmatpush1.msra.mxu0 0.0
    %1071 = vmatprep.subr.mxu0 0.0
    %1072 = vmatpush1.msra.mxu0 0.0
    %1073 = vmatprep.subr.mxu0 0.0
    %1074 = vmatpush1.msra.mxu0 0.0
    %1075 = vmatprep.subr.mxu0 %v979
    %1076 = vmatpush1.msra.mxu0 %v978
    %1077 = vmatprep.subr.mxu0 %v975
    %1078 = vmatpush1.msra.mxu0 %v974
    %1079 = vmatprep.subr.mxu0 %v971
    %1080 = vmatpush1.msra.mxu0 %v970
    %1081 = vmatprep.subr.mxu0 %v967
    %1082 = vmatpush1.msra.mxu0 %v966
    %1083 = vmatprep.subr.mxu0 %v963
    %1084 = vmatpush1.msra.mxu0 %v962
    %1085 = vmatprep.subr.mxu0 %v959
    %1086 = vmatpush1.msra.mxu0 %v958
    %1087 = vmatprep.subr.mxu0 %v955
    %1088 = vmatpush1.msra.mxu0 %v954
    %1089 = vmatprep.subr.mxu0 %v951
    %1090 = vmatpush1.msra.mxu0 %v950
    %1091 = vmatprep.subr.mxu0 %v947
    %1092 = vmatpush1.msra.mxu0 %v946
    %1093 = vmatprep.subr.mxu0 0.0
    %1094 = vmatpush2.msra.mxu0 0.0
    %1095 = vmatprep.subr.mxu0 0.0
    %1096 = vmatpush2.msra.mxu0 0.0
    %1097 = vmatprep.subr.mxu0 0.0
    %1098 = vmatpush2.msra.mxu0 0.0
    %1099 = vmatprep.subr.mxu0 0.0
    %1100 = vmatpush2.msra.mxu0 0.0
    %1101 = vmatprep.subr.mxu0 0.0
    %1102 = vmatpush2.msra.mxu0 0.0
    %1103 = vmatprep.subr.mxu0 0.0
    %1104 = vmatpush2.msra.mxu0 0.0
    %1105 = vmatprep.subr.mxu0 0.0
    %1106 = vmatpush2.msra.mxu0 0.0
    %1107 = vmatprep.subr.mxu0 0.0
    %1108 = vmatpush2.msra.mxu0 0.0
    %1109 = vmatprep.subr.mxu0 0.0
    %1110 = vmatpush2.msra.mxu0 0.0
    %1111 = vmatprep.subr.mxu0 0.0
    %1112 = vmatpush2.msra.mxu0 0.0
    %1113 = vmatprep.subr.mxu0 0.0
    %1114 = vmatpush2.msra.mxu0 0.0
    %1115 = vmatprep.subr.mxu0 0.0
    %1116 = vmatpush2.msra.mxu0 0.0
    %1117 = vmatprep.subr.mxu0 0.0
    %1118 = vmatpush2.msra.mxu0 0.0
    %1119 = vmatprep.subr.mxu0 0.0
    %1120 = vmatpush2.msra.mxu0 0.0
    %1121 = vmatprep.subr.mxu0 0.0
    %1122 = vmatpush2.msra.mxu0 0.0
    %1123 = vmatprep.subr.mxu0 0.0
    %1124 = vmatpush2.msra.mxu0 0.0
    %1125 = vmatprep.mubr.f32.mxu0 0.0
    %1126 = vmatmul.mubr.f32.gmra.mxu0 %v988
    %v1127 = vpop.f32.mrf.mxu0
    %v1128 = vadd.f32 %v985, %v1127
    %v1129 = vpop.f32.mrf.mxu0
    %v1130 = vadd.f32 %v985, %v1129
    %1131 = vdwg.mxu0
    %1132 = vst [vmem:[#allocation8] sm:$0xff] %v1057
    %1133 = vst [vmem:[#allocation8 + $0x8] sm:$0xff] %v1059
    %1134 = vst [vmem:[#allocation8 + $0x10] sm:$0xff] %v1128
    %1135 = vst [vmem:[#allocation8 + $0x18] sm:$0xff] %v1130
    // Predicated region
    $region34: #{tpu_custom_call.1} parent=1 // pred_check
      _
    $region35: #{tpu_custom_call.1} parent=1 // pred_check_branch
      %1137 = sbr.rel (0) target = $region37
    $region36: #{tpu_custom_call.1} parent=1 // pred_region
      %s1139 = ssub.s32 512, 512
      %1140 = vsyncadd [#allocation5], %s1139
      %s1142 = sshll.u32 [#allocation8], 4
      %s1143 = int_to_ptr.vmem [resolvable:$true] %s1142
      %1145 = dma.vmem_to_hbm [thread:$0]  %s1143, 512, %s6, [#allocation5]
    $region37: #{tpu_custom_call.1} parent=1 // pred_fallthru
      _
    // Predicated region
    $region38: #{tpu_custom_call.1} parent=1 // pred_check
      _
    $region39: #{tpu_custom_call.1} parent=1 // pred_check_branch
      %1147 = sbr.rel (0) target = $region41
    $region40: #{tpu_custom_call.1} parent=1 // pred_region
      %1148 = dma.done [#allocation5], 512
    $region41: #{tpu_custom_call.1} parent=1 // pred_fallthru
      _
    %1149 = vsyncpa [#allocation4], 1
    %1150 = vsyncpa [#allocation7], 1
    %1151 = vsyncpa [#allocation5], 1

</llo_original>
